<compile_context>
chip_gen: v7x
topology: tpu7x:2x2x1
jax: 0.10.0
libtpu: 0.0.40
codegen_flags: <defaults>
</compile_context>

<pallas_src>
from functools import partial

import jax
import jax.numpy as jnp
import numpy as np
from jax.experimental import pallas as pl
from jax.experimental.pallas import tpu as pltpu

NUM_FREQS = 10
IN_DIM = 3
ENC_DIM = IN_DIM * (1 + 2 * NUM_FREQS)   # 63 = [x | sin/cos pairs]
ENC_PAD = 64                             # 63 active rows + 1 zero-pad row
HIDDEN = 128
OUT_DIM = 4
DEFAULT_TILE_N = 2048                    # rows (lanes) per grid step


def tiny_nerf_kernel(x_ref, s_ref, phi_ref, w1_ref, b1_ref,
                     w2_ref, b2_ref, w3_ref, b3_ref, o_ref):
    xt = x_ref[...]                                  # (3, tile_n) f32
    tile_n = xt.shape[1]

    # --- positional encoding, lane-dense, f32 on the VPU ----------------------
    # z row r = S[r, c] * x_c + phi[r]:
    #   rows 0..2            : x (identity rows, phi = 0)
    #   rows 3+6k+c          : 2^k * x_c            (sin rows)
    #   rows 3+6k+3+c        : 2^k * x_c + pi/2     (cos rows: sin(z+pi/2)=cos)
    #   row 63               : 0                    (pad; W1 column is zero)
    # Three broadcast multiply-adds replace the old K=3 MXU matmul; the 2^k
    # scaling is exact in f32 so high-frequency terms match the reference.
    s = s_ref[...]                                   # (64, 3)  f32
    z = s[:, 0:1] * xt[0:1, :] + phi_ref[...]        # (64, tile_n)
    for c in range(1, IN_DIM):
        z = z + s[:, c:c + 1] * xt[c:c + 1, :]

    # Rows 0..2 pass x through untouched; the rest take sin (one full-width
    # EUP/VPU sweep + one select).  Result is the whole 63-wide encoding packed
    # into a single 64-deep matmul operand.
    row = jax.lax.broadcasted_iota(jnp.int32, (ENC_PAD, 1), 0)
    a1 = jnp.where(row < IN_DIM, z, jnp.sin(z))      # (64, tile_n) f32

    # --- Linear(63 -> 128) + ReLU: single K=64 bf16 matmul, f32 accumulation --
    h = jnp.dot(w1_ref[...], a1.astype(jnp.bfloat16),
                preferred_element_type=jnp.float32)  # (128, tile_n)
    h = jnp.maximum(h + b1_ref[...], 0.0)

    # --- Linear(128 -> 128) + ReLU --------------------------------------------
    h = jnp.dot(w2_ref[...], h.astype(jnp.bfloat16),
                preferred_element_type=jnp.float32)
    h = jnp.maximum(h + b2_ref[...], 0.0)

    # --- Linear(128 -> 4) ------------------------------------------------------
    o_ref[...] = jnp.dot(w3_ref[...], h.astype(jnp.bfloat16),
                         preferred_element_type=jnp.float32) + b3_ref[...]


def _pack_params(params):
    """Prepack: transposed scale/phase for the encoding, transposed bf16 weights."""
    w1, b1, w2, b2, w3, b3 = params

    freqs = 2.0 ** np.arange(NUM_FREQS, dtype=np.float32)   # == 2**linspace(0,9,10)
    S = np.zeros((ENC_PAD, IN_DIM), np.float32)
    phi = np.zeros((ENC_PAD, 1), np.float32)
    for c in range(IN_DIM):
        S[c, c] = 1.0                                        # identity rows -> x
    for k in range(NUM_FREQS):
        for c in range(IN_DIM):
            S[IN_DIM + 6 * k + c, c] = freqs[k]              # sin row
            S[IN_DIM + 6 * k + 3 + c, c] = freqs[k]          # cos row
            phi[IN_DIM + 6 * k + 3 + c, 0] = np.pi / 2.0     # phase-shift -> cos
    # Row 63 stays zero => encoding row 63 = sin(0) = 0, matched by a zero
    # column in the packed W1^T below.

    # h^T = W1^T @ [x; sin/cos]^T : packed W1^T is (128, 64), column i = W1 row i.
    w1f_t = jnp.zeros((HIDDEN, ENC_PAD), jnp.bfloat16).at[:, :ENC_DIM].set(
        w1.T.astype(jnp.bfloat16))

    return (jnp.asarray(S), jnp.asarray(phi),
            w1f_t, b1.reshape(HIDDEN, 1).astype(jnp.float32),
            w2.T.astype(jnp.bfloat16), b2.reshape(HIDDEN, 1).astype(jnp.float32),
            w3.T.astype(jnp.bfloat16), b3.reshape(OUT_DIM, 1).astype(jnp.float32))


@partial(jax.jit, static_argnames=("tile_n",))
def tiny_nerf(x, params, tile_n=DEFAULT_TILE_N):
    """x: (N, 3) float-like (any N). Returns (N, 4) float32."""
    x = x.astype(jnp.float32)
    n = x.shape[0]

    # Keep tile_n a multiple of 128 and target >= 4 parallel grid steps so both
    # v7x TensorCores stay loaded (and any padded tail tile load-balances).
    tile_n = max(128, (tile_n // 128) * 128)
    while tile_n > 128 and pl.cdiv(n, tile_n) < 4:
        tile_n //= 2

    n_pad = pl.cdiv(n, tile_n) * tile_n
    xt = x.T                                                 # (3, N) lane-dense
    if n_pad != n:
        xt = jnp.pad(xt, ((0, 0), (0, n_pad - n)))

    packed = _pack_params(params)

    def const_spec(a):
        # Grid-invariant weight/constant block (block == full array): fetched
        # once, stays resident in VMEM across all grid steps.
        return pl.BlockSpec(a.shape, lambda i: (0, 0))

    out_t = pl.pallas_call(
        tiny_nerf_kernel,
        out_shape=jax.ShapeDtypeStruct((OUT_DIM, n_pad), jnp.float32),
        grid=(n_pad // tile_n,),
        in_specs=[pl.BlockSpec((IN_DIM, tile_n), lambda i: (0, i))]
                 + [const_spec(a) for a in packed],
        out_specs=pl.BlockSpec((OUT_DIM, tile_n), lambda i: (0, i)),
        compiler_params=pltpu.CompilerParams(
            dimension_semantics=("parallel",),
            vmem_limit_bytes=32 * 1024 * 1024),
    )(xt, *packed)

    return out_t[:, :n].T                                    # (N, 4)


def init_params(key):
    """Deterministic synthetic weights with the shapes TinyNeRF.__init__ implies."""
    ks = jax.random.split(key, 6)

    def lin(kw, kb, fan_in, fan_out):
        bound = 1.0 / np.sqrt(fan_in)
        w = jax.random.uniform(kw, (fan_in, fan_out), jnp.float32, -bound, bound)
        b = jax.random.uniform(kb, (fan_out,), jnp.float32, -bound, bound)
        return w, b

    w1, b1 = lin(ks[0], ks[1], ENC_DIM, HIDDEN)
    w2, b2 = lin(ks[2], ks[3], HIDDEN, HIDDEN)
    w3, b3 = lin(ks[4], ks[5], HIDDEN, OUT_DIM)
    return (w1, b1, w2, b2, w3, b3)


def ref_forward(x, params):
    """Plain-JAX reference mirroring the PyTorch module exactly."""
    w1, b1, w2, b2, w3, b3 = params
    freqs = 2.0 ** jnp.linspace(0.0, NUM_FREQS - 1, NUM_FREQS)
    feats = [x]
    for f in freqs:
        feats.append(jnp.sin(f * x))
        feats.append(jnp.cos(f * x))
    enc = jnp.concatenate(feats, axis=-1)                    # (N, 63)
    h = jax.nn.relu(enc @ w1 + b1)
    h = jax.nn.relu(h @ w2 + b2)
    return h @ w3 + b3


if __name__ == "__main__":
    key = jax.random.PRNGKey(0)
    k_param, k_x = jax.random.split(key)
    params = init_params(k_param)

    N = 1000                       # non-multiple of 128: exercises tail padding
    x = jax.random.normal(k_x, (N, IN_DIM), dtype=jnp.float32)

    out = jax.block_until_ready(tiny_nerf(x, params))

    ref = ref_forward(x, params)
    np.testing.assert_allclose(np.asarray(out), np.asarray(ref),
                               rtol=5e-2, atol=5e-2)
    assert out.shape == (N, OUT_DIM) and out.dtype == jnp.float32
    print("KERNEL_OK")
</pallas_src>

<mosaic_0001>
module attributes {stable_mosaic.version = 11 : i64} {
  func.func @tiny_nerf_kernel(%arg0: i32, %arg1: memref<3x256xf32, #tpu.memory_space<vmem>>, %arg2: memref<64x3xf32, #tpu.memory_space<vmem>>, %arg3: memref<64x1xf32, #tpu.memory_space<vmem>>, %arg4: memref<128x64xbf16, #tpu.memory_space<vmem>>, %arg5: memref<128x1xf32, #tpu.memory_space<vmem>>, %arg6: memref<128x128xbf16, #tpu.memory_space<vmem>>, %arg7: memref<128x1xf32, #tpu.memory_space<vmem>>, %arg8: memref<4x128xbf16, #tpu.memory_space<vmem>>, %arg9: memref<4x1xf32, #tpu.memory_space<vmem>>, %arg10: memref<4x256xf32, #tpu.memory_space<vmem>>) attributes {dimension_semantics = [#tpu.dimension_semantics<parallel>], iteration_bounds = array<i64: 4>, scalar_prefetch = 0 : i64, scratch_operands = 0 : i64, tpu.core_type = #tpu.core_type<tc>, window_params = [{transform_indices = @transform_0, window_bounds = array<i64: 3, 256>}, {pipeline_mode = #tpu.pipeline_mode<synchronous>, transform_indices = @transform_1, window_bounds = array<i64: 64, 3>}, {pipeline_mode = #tpu.pipeline_mode<synchronous>, transform_indices = @transform_2, window_bounds = array<i64: 64, 1>}, {pipeline_mode = #tpu.pipeline_mode<synchronous>, transform_indices = @transform_3, window_bounds = array<i64: 128, 64>}, {pipeline_mode = #tpu.pipeline_mode<synchronous>, transform_indices = @transform_4, window_bounds = array<i64: 128, 1>}, {pipeline_mode = #tpu.pipeline_mode<synchronous>, transform_indices = @transform_5, window_bounds = array<i64: 128, 128>}, {pipeline_mode = #tpu.pipeline_mode<synchronous>, transform_indices = @transform_6, window_bounds = array<i64: 128, 1>}, {pipeline_mode = #tpu.pipeline_mode<synchronous>, transform_indices = @transform_7, window_bounds = array<i64: 4, 128>}, {pipeline_mode = #tpu.pipeline_mode<synchronous>, transform_indices = @transform_8, window_bounds = array<i64: 4, 1>}, {transform_indices = @transform_9, window_bounds = array<i64: 4, 256>}]} {
    %c0 = arith.constant 0 : index
    %c0_0 = arith.constant 0 : index
    %0 = vector.load %arg1[%c0, %c0_0] : memref<3x256xf32, #tpu.memory_space<vmem>>, vector<3x256xf32>
    %c0_1 = arith.constant 0 : index
    %c0_2 = arith.constant 0 : index
    %1 = vector.load %arg2[%c0_1, %c0_2] : memref<64x3xf32, #tpu.memory_space<vmem>>, vector<64x3xf32>
    %2 = vector.extract_strided_slice %1 {offsets = [0, 0], sizes = [64, 1], strides = [1, 1]} : vector<64x3xf32> to vector<64x1xf32>
    %3 = vector.extract_strided_slice %0 {offsets = [0, 0], sizes = [1, 256], strides = [1, 1]} : vector<3x256xf32> to vector<1x256xf32>
    %4 = vector.broadcast %2 : vector<64x1xf32> to vector<64x256xf32>
    %5 = vector.broadcast %3 : vector<1x256xf32> to vector<64x256xf32>
    %6 = arith.mulf %4, %5 : vector<64x256xf32>
    %c0_3 = arith.constant 0 : index
    %c0_4 = arith.constant 0 : index
    %7 = vector.load %arg3[%c0_3, %c0_4] : memref<64x1xf32, #tpu.memory_space<vmem>>, vector<64x1xf32>
    %8 = vector.broadcast %7 : vector<64x1xf32> to vector<64x256xf32>
    %9 = arith.addf %6, %8 : vector<64x256xf32>
    %10 = vector.extract_strided_slice %1 {offsets = [0, 1], sizes = [64, 1], strides = [1, 1]} : vector<64x3xf32> to vector<64x1xf32>
    %11 = vector.extract_strided_slice %0 {offsets = [1, 0], sizes = [1, 256], strides = [1, 1]} : vector<3x256xf32> to vector<1x256xf32>
    %12 = vector.broadcast %10 : vector<64x1xf32> to vector<64x256xf32>
    %13 = vector.broadcast %11 : vector<1x256xf32> to vector<64x256xf32>
    %14 = arith.mulf %12, %13 : vector<64x256xf32>
    %15 = arith.addf %9, %14 : vector<64x256xf32>
    %16 = vector.extract_strided_slice %1 {offsets = [0, 2], sizes = [64, 1], strides = [1, 1]} : vector<64x3xf32> to vector<64x1xf32>
    %17 = vector.extract_strided_slice %0 {offsets = [2, 0], sizes = [1, 256], strides = [1, 1]} : vector<3x256xf32> to vector<1x256xf32>
    %18 = vector.broadcast %16 : vector<64x1xf32> to vector<64x256xf32>
    %19 = vector.broadcast %17 : vector<1x256xf32> to vector<64x256xf32>
    %20 = arith.mulf %18, %19 : vector<64x256xf32>
    %21 = arith.addf %15, %20 : vector<64x256xf32>
    %22 = tpu.iota {dimensions = array<i32: 0>} : vector<64x1xi32>
    %c3_i32 = arith.constant 3 : i32
    %23 = vector.broadcast %c3_i32 : i32 to vector<64x1xi32>
    %24 = arith.cmpi slt, %22, %23 : vector<64x1xi32>
    %25 = math.sin %21 : vector<64x256xf32>
    %26 = vector.shape_cast %24 : vector<64x1xi1> to vector<64x1xi1>
    %27 = vector.broadcast %26 : vector<64x1xi1> to vector<64x256xi1>
    %28 = arith.select %27, %21, %25 : vector<64x256xi1>, vector<64x256xf32>
    %c0_5 = arith.constant 0 : index
    %c0_6 = arith.constant 0 : index
    %29 = vector.load %arg4[%c0_5, %c0_6] : memref<128x64xbf16, #tpu.memory_space<vmem>>, vector<128x64xbf16>
    %30 = arith.truncf %28 : vector<64x256xf32> to vector<64x256xbf16>
    %cst = arith.constant dense<0.000000e+00> : vector<128x256xf32>
    %31 = tpu.matmul %29, %30, %cst {dimension_numbers = #tpu.dot_dimension_numbers<[1], [0], [0], [1], [0, 0, 1, 1], [], []>} : vector<128x64xbf16>, vector<64x256xbf16>, vector<128x256xf32> -> vector<128x256xf32>
    %c0_7 = arith.constant 0 : index
    %c0_8 = arith.constant 0 : index
    %32 = vector.load %arg5[%c0_7, %c0_8] : memref<128x1xf32, #tpu.memory_space<vmem>>, vector<128x1xf32>
    %33 = vector.broadcast %32 : vector<128x1xf32> to vector<128x256xf32>
    %34 = arith.addf %31, %33 : vector<128x256xf32>
    %cst_9 = arith.constant 0.000000e+00 : f32
    %35 = vector.broadcast %cst_9 : f32 to vector<128x256xf32>
    %36 = arith.maximumf %34, %35 : vector<128x256xf32>
    %c0_10 = arith.constant 0 : index
    %c0_11 = arith.constant 0 : index
    %37 = vector.load %arg6[%c0_10, %c0_11] : memref<128x128xbf16, #tpu.memory_space<vmem>>, vector<128x128xbf16>
    %38 = arith.truncf %36 : vector<128x256xf32> to vector<128x256xbf16>
    %cst_12 = arith.constant dense<0.000000e+00> : vector<128x256xf32>
    %39 = tpu.matmul %37, %38, %cst_12 {dimension_numbers = #tpu.dot_dimension_numbers<[1], [0], [0], [1], [0, 0, 1, 1], [], []>} : vector<128x128xbf16>, vector<128x256xbf16>, vector<128x256xf32> -> vector<128x256xf32>
    %c0_13 = arith.constant 0 : index
    %c0_14 = arith.constant 0 : index
    %40 = vector.load %arg7[%c0_13, %c0_14] : memref<128x1xf32, #tpu.memory_space<vmem>>, vector<128x1xf32>
    %41 = vector.broadcast %40 : vector<128x1xf32> to vector<128x256xf32>
    %42 = arith.addf %39, %41 : vector<128x256xf32>
    %cst_15 = arith.constant 0.000000e+00 : f32
    %43 = vector.broadcast %cst_15 : f32 to vector<128x256xf32>
    %44 = arith.maximumf %42, %43 : vector<128x256xf32>
    %c0_16 = arith.constant 0 : index
    %c0_17 = arith.constant 0 : index
    %45 = vector.load %arg8[%c0_16, %c0_17] : memref<4x128xbf16, #tpu.memory_space<vmem>>, vector<4x128xbf16>
    %46 = arith.truncf %44 : vector<128x256xf32> to vector<128x256xbf16>
    %cst_18 = arith.constant dense<0.000000e+00> : vector<4x256xf32>
    %47 = tpu.matmul %45, %46, %cst_18 {dimension_numbers = #tpu.dot_dimension_numbers<[1], [0], [0], [1], [0, 0, 1, 1], [], []>} : vector<4x128xbf16>, vector<128x256xbf16>, vector<4x256xf32> -> vector<4x256xf32>
    %c0_19 = arith.constant 0 : index
    %c0_20 = arith.constant 0 : index
    %48 = vector.load %arg9[%c0_19, %c0_20] : memref<4x1xf32, #tpu.memory_space<vmem>>, vector<4x1xf32>
    %49 = vector.broadcast %48 : vector<4x1xf32> to vector<4x256xf32>
    %50 = arith.addf %47, %49 : vector<4x256xf32>
    %c0_21 = arith.constant 0 : index
    %c0_22 = arith.constant 0 : index
    %51 = vector.load %arg10[%c0_21, %c0_22] : memref<4x256xf32, #tpu.memory_space<vmem>>, vector<4x256xf32>
    tpu.vector_store %arg10[%c0_21, %c0_22], %50 {strides = array<i32>} : memref<4x256xf32, #tpu.memory_space<vmem>>, vector<4x256xf32>,
    return
  }
  func.func @transform_0(%arg0: i32) -> (i32, i32) {
    %c0_i32 = arith.constant 0 : i32
    %c0_i32_0 = arith.constant 0 : i32
    return %c0_i32, %arg0 : i32, i32
  }
  func.func @transform_1(%arg0: i32) -> (i32, i32) {
    %c0_i32 = arith.constant 0 : i32
    %c0_i32_0 = arith.constant 0 : i32
    %c0_i32_1 = arith.constant 0 : i32
    return %c0_i32, %c0_i32_0 : i32, i32
  }
  func.func @transform_2(%arg0: i32) -> (i32, i32) {
    %c0_i32 = arith.constant 0 : i32
    %c0_i32_0 = arith.constant 0 : i32
    %c0_i32_1 = arith.constant 0 : i32
    return %c0_i32, %c0_i32_0 : i32, i32
  }
  func.func @transform_3(%arg0: i32) -> (i32, i32) {
    %c0_i32 = arith.constant 0 : i32
    %c0_i32_0 = arith.constant 0 : i32
    %c0_i32_1 = arith.constant 0 : i32
    return %c0_i32, %c0_i32_0 : i32, i32
  }
  func.func @transform_4(%arg0: i32) -> (i32, i32) {
    %c0_i32 = arith.constant 0 : i32
    %c0_i32_0 = arith.constant 0 : i32
    %c0_i32_1 = arith.constant 0 : i32
    return %c0_i32, %c0_i32_0 : i32, i32
  }
  func.func @transform_5(%arg0: i32) -> (i32, i32) {
    %c0_i32 = arith.constant 0 : i32
    %c0_i32_0 = arith.constant 0 : i32
    %c0_i32_1 = arith.constant 0 : i32
    return %c0_i32, %c0_i32_0 : i32, i32
  }
  func.func @transform_6(%arg0: i32) -> (i32, i32) {
    %c0_i32 = arith.constant 0 : i32
    %c0_i32_0 = arith.constant 0 : i32
    %c0_i32_1 = arith.constant 0 : i32
    return %c0_i32, %c0_i32_0 : i32, i32
  }
  func.func @transform_7(%arg0: i32) -> (i32, i32) {
    %c0_i32 = arith.constant 0 : i32
    %c0_i32_0 = arith.constant 0 : i32
    %c0_i32_1 = arith.constant 0 : i32
    return %c0_i32, %c0_i32_0 : i32, i32
  }
  func.func @transform_8(%arg0: i32) -> (i32, i32) {
    %c0_i32 = arith.constant 0 : i32
    %c0_i32_0 = arith.constant 0 : i32
    %c0_i32_1 = arith.constant 0 : i32
    return %c0_i32, %c0_i32_0 : i32, i32
  }
  func.func @transform_9(%arg0: i32) -> (i32, i32) {
    %c0_i32 = arith.constant 0 : i32
    %c0_i32_0 = arith.constant 0 : i32
    return %c0_i32, %arg0 : i32, i32
  }
}

</mosaic_0001>

<llo_original>
// kernel: tiny_nerf.1
$region0: #{tiny_nerf.1}
  #allocation0 [shape = 'u32[]', space=smem, size = 0x4, offset = 0x4, fixed_abs, tag = 'smem constant byte address 0x4 - core index']
  #allocation1 [shape = 'u32[144,128]{1,0:T(1,128)}', space=vmem, size = 0x12000, scoped, tag = 'internal scratch']
  %s0 = inlined_call_operand.vmem [shape: f32[3,1024], index: 0, kind: input, shape index: {}]
  %s1 = inlined_call_operand.vmem [shape: f32[64,3], index: 1, kind: input, shape index: {}]
  %s2 = inlined_call_operand.vmem [shape: f32[64,1], index: 2, kind: input, shape index: {}]
  %s3 = inlined_call_operand.vmem [shape: bf16[128,64], index: 3, kind: input, shape index: {}]
  %s4 = inlined_call_operand.vmem [shape: f32[128,1], index: 4, kind: input, shape index: {}]
  %s5 = inlined_call_operand.vmem [shape: bf16[128,128], index: 5, kind: input, shape index: {}]
  %s6 = inlined_call_operand.vmem [shape: f32[128,1], index: 6, kind: input, shape index: {}]
  %s7 = inlined_call_operand.vmem [shape: bf16[4,128], index: 7, kind: input, shape index: {}]
  %s8 = inlined_call_operand.vmem [shape: f32[4,1], index: 8, kind: input, shape index: {}]
  %s9 = inlined_call_operand.vmem [shape: f32[4,1024], index: 9, kind: output, shape index: {}]
  %s10 = sld [smem:[#allocation0]]
  $region69: #{tiny_nerf.1} parent=0
    _
  %s12 = ssub.s32 1, %s10
  %s13 = scalar_select 0, %s12, %s10
  loop: start=0, step=1, limit=6
  $region2: #{tiny_nerf.1} parent=0 // loop_pre_header
    _
  $region3: #{tiny_nerf.1} parent=0 // loop_header
    %s15 = sphi 0, %s19
    %p16 = scmp.ge.s32.totalorder %s15, 6
    %s25 = sphi 0, %s27
    %s28 = sphi 0, %s25
    %s29 = sphi 0, %s28
    %s45 = sphi 0, %s29
    %s49 = sphi 0, %s49
    %s51 = sphi 0, %s49
    %s52 = sphi 0, %s51
    %s66 = sphi 0, %s52
    %s70 = sphi 0, %s70
    %s72 = sphi 0, %s70
    %s73 = sphi 0, %s72
    %s87 = sphi 0, %s73
    %s91 = sphi 0, %s91
    %s93 = sphi 0, %s91
    %s94 = sphi 0, %s93
    %s108 = sphi 0, %s94
    %s112 = sphi 0, %s112
    %s114 = sphi 0, %s112
    %s115 = sphi 0, %s114
    %s129 = sphi 0, %s115
    %s133 = sphi 0, %s133
    %s135 = sphi 0, %s133
    %s136 = sphi 0, %s135
    %s150 = sphi 0, %s136
    %s154 = sphi 0, %s154
    %s156 = sphi 0, %s154
    %s157 = sphi 0, %s156
    %s171 = sphi 0, %s157
    %s175 = sphi 0, %s175
    %s177 = sphi 0, %s175
    %s178 = sphi 0, %s177
    %s192 = sphi 0, %s178
    %s196 = sphi 0, %s196
    %s198 = sphi 0, %s196
    %s199 = sphi 0, %s198
    %s213 = sphi 0, %s199
    %s219 = sphi 0, %s221
    %s222 = sphi 0, %s219
    %s223 = sphi 0, %s222
    %s239 = sphi 0, %s223
  $region4: #{tiny_nerf.1} parent=0 // loop_header_branch
    %18 = sbr.rel (%p16) target = $region8
  $region5: #{tiny_nerf.1} parent=0 // loop_body
    %s20 = ssub.s32 %s15, 1
    %s21 = ssub.s32 %s15, 2
    %s22 = sadd.s32 %s15, 1
    %s23 = ssub.s32 %s15, %s22
    %p24 = scmp.eq.s32.totalorder %s23, 0
    %s26 = sadd.s32 %s25, 1
    %s27 = scalar_select %p24, %s25, %s26
    %p30 = pneg %p24
    %p31 = scmp.eq.s32.totalorder %s15, 3
    %p32 = por %p30, %p31
    %p33 = scmp.ne.s32.totalorder %s25, %s28
    %p34 = scmp.eq.s32.totalorder %s15, 0
    %p35 = por %p33, %p34
    %p36 = scmp.ne.s32.totalorder %s25, %s28
    %p37 = scmp.eq.s32.totalorder %s20, 3
    %p38 = por %p36, %p37
    %p39 = scmp.ne.s32.totalorder %s28, %s29
    %p40 = scmp.eq.s32.totalorder %s20, 0
    %p41 = por %p39, %p40
    %p42 = scmp.ne.s32.totalorder %s28, %s29
    %p43 = scmp.eq.s32.totalorder %s21, 3
    %p44 = por %p42, %p43
    %p46 = scmp.ne.s32.totalorder %s29, %s45
    %p47 = scmp.eq.s32.totalorder %s21, 0
    %p48 = por %p46, %p47
    %s50 = sadd.s32 %s49, 1
    %p53 = scmp.eq.s32.totalorder %s15, 3
    %p54 = scmp.ne.s32.totalorder %s49, %s51
    %p55 = scmp.eq.s32.totalorder %s15, 0
    %p56 = por %p54, %p55
    %p57 = scmp.ne.s32.totalorder %s49, %s51
    %p58 = scmp.eq.s32.totalorder %s20, 3
    %p59 = por %p57, %p58
    %p60 = scmp.ne.s32.totalorder %s51, %s52
    %p61 = scmp.eq.s32.totalorder %s20, 0
    %p62 = por %p60, %p61
    %p63 = scmp.ne.s32.totalorder %s51, %s52
    %p64 = scmp.eq.s32.totalorder %s21, 3
    %p65 = por %p63, %p64
    %p67 = scmp.ne.s32.totalorder %s52, %s66
    %p68 = scmp.eq.s32.totalorder %s21, 0
    %p69 = por %p67, %p68
    %s71 = sadd.s32 %s70, 1
    %p74 = scmp.eq.s32.totalorder %s15, 3
    %p75 = scmp.ne.s32.totalorder %s70, %s72
    %p76 = scmp.eq.s32.totalorder %s15, 0
    %p77 = por %p75, %p76
    %p78 = scmp.ne.s32.totalorder %s70, %s72
    %p79 = scmp.eq.s32.totalorder %s20, 3
    %p80 = por %p78, %p79
    %p81 = scmp.ne.s32.totalorder %s72, %s73
    %p82 = scmp.eq.s32.totalorder %s20, 0
    %p83 = por %p81, %p82
    %p84 = scmp.ne.s32.totalorder %s72, %s73
    %p85 = scmp.eq.s32.totalorder %s21, 3
    %p86 = por %p84, %p85
    %p88 = scmp.ne.s32.totalorder %s73, %s87
    %p89 = scmp.eq.s32.totalorder %s21, 0
    %p90 = por %p88, %p89
    %s92 = sadd.s32 %s91, 1
    %p95 = scmp.eq.s32.totalorder %s15, 3
    %p96 = scmp.ne.s32.totalorder %s91, %s93
    %p97 = scmp.eq.s32.totalorder %s15, 0
    %p98 = por %p96, %p97
    %p99 = scmp.ne.s32.totalorder %s91, %s93
    %p100 = scmp.eq.s32.totalorder %s20, 3
    %p101 = por %p99, %p100
    %p102 = scmp.ne.s32.totalorder %s93, %s94
    %p103 = scmp.eq.s32.totalorder %s20, 0
    %p104 = por %p102, %p103
    %p105 = scmp.ne.s32.totalorder %s93, %s94
    %p106 = scmp.eq.s32.totalorder %s21, 3
    %p107 = por %p105, %p106
    %p109 = scmp.ne.s32.totalorder %s94, %s108
    %p110 = scmp.eq.s32.totalorder %s21, 0
    %p111 = por %p109, %p110
    %s113 = sadd.s32 %s112, 1
    %p116 = scmp.eq.s32.totalorder %s15, 3
    %p117 = scmp.ne.s32.totalorder %s112, %s114
    %p118 = scmp.eq.s32.totalorder %s15, 0
    %p119 = por %p117, %p118
    %p120 = scmp.ne.s32.totalorder %s112, %s114
    %p121 = scmp.eq.s32.totalorder %s20, 3
    %p122 = por %p120, %p121
    %p123 = scmp.ne.s32.totalorder %s114, %s115
    %p124 = scmp.eq.s32.totalorder %s20, 0
    %p125 = por %p123, %p124
    %p126 = scmp.ne.s32.totalorder %s114, %s115
    %p127 = scmp.eq.s32.totalorder %s21, 3
    %p128 = por %p126, %p127
    %p130 = scmp.ne.s32.totalorder %s115, %s129
    %p131 = scmp.eq.s32.totalorder %s21, 0
    %p132 = por %p130, %p131
    %s134 = sadd.s32 %s133, 1
    %p137 = scmp.eq.s32.totalorder %s15, 3
    %p138 = scmp.ne.s32.totalorder %s133, %s135
    %p139 = scmp.eq.s32.totalorder %s15, 0
    %p140 = por %p138, %p139
    %p141 = scmp.ne.s32.totalorder %s133, %s135
    %p142 = scmp.eq.s32.totalorder %s20, 3
    %p143 = por %p141, %p142
    %p144 = scmp.ne.s32.totalorder %s135, %s136
    %p145 = scmp.eq.s32.totalorder %s20, 0
    %p146 = por %p144, %p145
    %p147 = scmp.ne.s32.totalorder %s135, %s136
    %p148 = scmp.eq.s32.totalorder %s21, 3
    %p149 = por %p147, %p148
    %p151 = scmp.ne.s32.totalorder %s136, %s150
    %p152 = scmp.eq.s32.totalorder %s21, 0
    %p153 = por %p151, %p152
    %s155 = sadd.s32 %s154, 1
    %p158 = scmp.eq.s32.totalorder %s15, 3
    %p159 = scmp.ne.s32.totalorder %s154, %s156
    %p160 = scmp.eq.s32.totalorder %s15, 0
    %p161 = por %p159, %p160
    %p162 = scmp.ne.s32.totalorder %s154, %s156
    %p163 = scmp.eq.s32.totalorder %s20, 3
    %p164 = por %p162, %p163
    %p165 = scmp.ne.s32.totalorder %s156, %s157
    %p166 = scmp.eq.s32.totalorder %s20, 0
    %p167 = por %p165, %p166
    %p168 = scmp.ne.s32.totalorder %s156, %s157
    %p169 = scmp.eq.s32.totalorder %s21, 3
    %p170 = por %p168, %p169
    %p172 = scmp.ne.s32.totalorder %s157, %s171
    %p173 = scmp.eq.s32.totalorder %s21, 0
    %p174 = por %p172, %p173
    %s176 = sadd.s32 %s175, 1
    %p179 = scmp.eq.s32.totalorder %s15, 3
    %p180 = scmp.ne.s32.totalorder %s175, %s177
    %p181 = scmp.eq.s32.totalorder %s15, 0
    %p182 = por %p180, %p181
    %p183 = scmp.ne.s32.totalorder %s175, %s177
    %p184 = scmp.eq.s32.totalorder %s20, 3
    %p185 = por %p183, %p184
    %p186 = scmp.ne.s32.totalorder %s177, %s178
    %p187 = scmp.eq.s32.totalorder %s20, 0
    %p188 = por %p186, %p187
    %p189 = scmp.ne.s32.totalorder %s177, %s178
    %p190 = scmp.eq.s32.totalorder %s21, 3
    %p191 = por %p189, %p190
    %p193 = scmp.ne.s32.totalorder %s178, %s192
    %p194 = scmp.eq.s32.totalorder %s21, 0
    %p195 = por %p193, %p194
    %s197 = sadd.s32 %s196, 1
    %p200 = scmp.eq.s32.totalorder %s15, 3
    %p201 = scmp.ne.s32.totalorder %s196, %s198
    %p202 = scmp.eq.s32.totalorder %s15, 0
    %p203 = por %p201, %p202
    %p204 = scmp.ne.s32.totalorder %s196, %s198
    %p205 = scmp.eq.s32.totalorder %s20, 3
    %p206 = por %p204, %p205
    %p207 = scmp.ne.s32.totalorder %s198, %s199
    %p208 = scmp.eq.s32.totalorder %s20, 0
    %p209 = por %p207, %p208
    %p210 = scmp.ne.s32.totalorder %s198, %s199
    %p211 = scmp.eq.s32.totalorder %s21, 3
    %p212 = por %p210, %p211
    %p214 = scmp.ne.s32.totalorder %s199, %s213
    %p215 = scmp.eq.s32.totalorder %s21, 0
    %p216 = por %p214, %p215
    %s217 = ssub.s32 %s15, %s22
    %p218 = scmp.eq.s32.totalorder %s217, 0
    %s220 = sadd.s32 %s219, 1
    %s221 = scalar_select %p218, %s219, %s220
    %p224 = pneg %p218
    %p225 = scmp.eq.s32.totalorder %s15, 3
    %p226 = por %p224, %p225
    %p227 = scmp.ne.s32.totalorder %s219, %s222
    %p228 = scmp.eq.s32.totalorder %s15, 0
    %p229 = por %p227, %p228
    %p230 = scmp.ne.s32.totalorder %s219, %s222
    %p231 = scmp.eq.s32.totalorder %s20, 3
    %p232 = por %p230, %p231
    %p233 = scmp.ne.s32.totalorder %s222, %s223
    %p234 = scmp.eq.s32.totalorder %s20, 0
    %p235 = por %p233, %p234
    %p236 = scmp.ne.s32.totalorder %s222, %s223
    %p237 = scmp.eq.s32.totalorder %s21, 3
    %p238 = por %p236, %p237
    %p240 = scmp.ne.s32.totalorder %s223, %s239
    %p241 = scmp.eq.s32.totalorder %s21, 0
    %p242 = por %p240, %p241
    %p243 = scmp.le.s32.totalorder 1, %s15
    %p244 = scmp.lt.s32.totalorder %s15, 5
    %p245 = pnand %p243, %p244
    %p246 = pneg %p245
    // Predicated region
    $region9: #{tiny_nerf.1} parent=5 // pred_check
      _
    $region10: #{tiny_nerf.1} parent=5 // pred_check_branch
      %248 = sbr.rel (%p245) target = $region12
    $region11: #{tiny_nerf.1} parent=5 // pred_region
      %s249 = ssub.s32 %s15, 1
      // Predicated region
      $region13: #{tiny_nerf.1} parent=11 // pred_check
        %p250 = pneg %p62
      $region14: #{tiny_nerf.1} parent=11 // pred_check_branch
        %252 = sbr.rel (%p250) target = $region16
      $region15: #{tiny_nerf.1} parent=11 // pred_region
        _
      $region16: #{tiny_nerf.1} parent=11 // pred_fallthru
        _
      // Predicated region
      $region17: #{tiny_nerf.1} parent=11 // pred_check
        %p253 = pneg %p83
      $region18: #{tiny_nerf.1} parent=11 // pred_check_branch
        %255 = sbr.rel (%p253) target = $region20
      $region19: #{tiny_nerf.1} parent=11 // pred_region
        _
      $region20: #{tiny_nerf.1} parent=11 // pred_fallthru
        _
      // Predicated region
      $region21: #{tiny_nerf.1} parent=11 // pred_check
        %p256 = pneg %p104
      $region22: #{tiny_nerf.1} parent=11 // pred_check_branch
        %258 = sbr.rel (%p256) target = $region24
      $region23: #{tiny_nerf.1} parent=11 // pred_region
        _
      $region24: #{tiny_nerf.1} parent=11 // pred_fallthru
        _
      // Predicated region
      $region25: #{tiny_nerf.1} parent=11 // pred_check
        %p259 = pneg %p125
      $region26: #{tiny_nerf.1} parent=11 // pred_check_branch
        %261 = sbr.rel (%p259) target = $region28
      $region27: #{tiny_nerf.1} parent=11 // pred_region
        _
      $region28: #{tiny_nerf.1} parent=11 // pred_fallthru
        _
      // Predicated region
      $region29: #{tiny_nerf.1} parent=11 // pred_check
        %p262 = pneg %p146
      $region30: #{tiny_nerf.1} parent=11 // pred_check_branch
        %264 = sbr.rel (%p262) target = $region32
      $region31: #{tiny_nerf.1} parent=11 // pred_region
        _
      $region32: #{tiny_nerf.1} parent=11 // pred_fallthru
        _
      // Predicated region
      $region33: #{tiny_nerf.1} parent=11 // pred_check
        %p265 = pneg %p167
      $region34: #{tiny_nerf.1} parent=11 // pred_check_branch
        %267 = sbr.rel (%p265) target = $region36
      $region35: #{tiny_nerf.1} parent=11 // pred_region
        _
      $region36: #{tiny_nerf.1} parent=11 // pred_fallthru
        _
      // Predicated region
      $region37: #{tiny_nerf.1} parent=11 // pred_check
        %p268 = pneg %p188
      $region38: #{tiny_nerf.1} parent=11 // pred_check_branch
        %270 = sbr.rel (%p268) target = $region40
      $region39: #{tiny_nerf.1} parent=11 // pred_region
        _
      $region40: #{tiny_nerf.1} parent=11 // pred_fallthru
        _
      // Predicated region
      $region41: #{tiny_nerf.1} parent=11 // pred_check
        %p271 = pneg %p209
      $region42: #{tiny_nerf.1} parent=11 // pred_check_branch
        %273 = sbr.rel (%p271) target = $region44
      $region43: #{tiny_nerf.1} parent=11 // pred_region
        _
      $region44: #{tiny_nerf.1} parent=11 // pred_fallthru
        _
    $region12: #{tiny_nerf.1} parent=5 // pred_fallthru
      _
    %p274 = scmp.lt.s32.totalorder %s15, 4
    // Predicated region
    $region45: #{tiny_nerf.1} parent=5 // pred_check
      %p275 = pneg %p274
    $region46: #{tiny_nerf.1} parent=5 // pred_check_branch
      %277 = sbr.rel (%p275) target = $region48
    $region47: #{tiny_nerf.1} parent=5 // pred_region
      // Predicated region
      $region49: #{tiny_nerf.1} parent=47 // pred_check
        %p278 = pneg %p35
      $region50: #{tiny_nerf.1} parent=47 // pred_check_branch
        %280 = sbr.rel (%p278) target = $region52
      $region51: #{tiny_nerf.1} parent=47 // pred_region
        %s281 = smul.u32 2, %s15
        %p282 = scmp.lt.s32.totalorder %s281, 7
        %s283 = scalar_select %p282, %s281, 7
        %s284 = smul.addr %s283, 4
        %s285 = scalar_lea.vmem %s0, %s284
        %s286 = smul.u32 2, %s15
      $region52: #{tiny_nerf.1} parent=47 // pred_fallthru
        _
    $region48: #{tiny_nerf.1} parent=5 // pred_fallthru
      _
    %p287 = scmp.le.s32.totalorder 1, %s15
    %p288 = scmp.lt.s32.totalorder %s15, 5
    %p289 = pnand %p287, %p288
    %p290 = pneg %p289
    // Predicated region
    $region53: #{tiny_nerf.1} parent=5 // pred_check
      _
    $region54: #{tiny_nerf.1} parent=5 // pred_check_branch
      %292 = sbr.rel (%p289) target = $region56
    $region55: #{tiny_nerf.1} parent=5 // pred_region
      %s293 = ssub.s32 %s15, 1
      %s294 = smul.u32 2, %s20
      %p295 = scmp.lt.s32.totalorder %s294, 7
      %s296 = scalar_select %p295, %s294, 7
      %s297 = smul.addr %s296, 4
      %s298 = scalar_lea.vmem %s0, %s297
      %p299 = pneg %p41
      %p300 = pneg %p38
      %p301 = pneg %p62
      %p302 = pneg %p59
      %p303 = pneg %p83
      %p304 = pneg %p80
      %p305 = pneg %p104
      %p306 = pneg %p101
      %p307 = pneg %p125
      %p308 = pneg %p122
      %p309 = pneg %p146
      %p310 = pneg %p143
      %p311 = pneg %p167
      %p312 = pneg %p164
      %p313 = pneg %p188
      %p314 = pneg %p185
      %p315 = pneg %p209
      %p316 = pneg %p206
      %p317 = pneg %p235
      %p318 = pneg %p232
      %s319 = smul.u32 2, %s20
      %p320 = scmp.lt.s32.totalorder %s319, 7
      %s321 = scalar_select %p320, %s319, 7
      %s322 = smul.addr %s321, 4
      %s323 = scalar_lea.vmem %s9, %s322
      %s324 = smul.u32 2, %s20
      %p325 = scmp.lt.s32.totalorder %s324, 7
      %s326 = scalar_select %p325, %s324, 7
      %s327 = smul.addr %s326, 4
      %s328 = scalar_lea.vmem %s0, %s327
      %s329 = smul.u32 2, %s20
      %s330 = smul.u32 2, %s20
      %p331 = scmp.lt.s32.totalorder %s330, 7
      %s332 = scalar_select %p331, %s330, 7
      %s333 = smul.addr %s332, 4
      %s334 = scalar_lea.vmem %s9, %s333
      %s335 = smul.u32 2, %s20
      %v337 = vld [vmem:[%s328] sm:$0x77]
      %v338 = vld [vmem:[%s1] sm:$0xff]
      %v339 = vld [vmem:[%s1 + $0x8] sm:$0xff]
      %v340 = vld [vmem:[%s1 + $0x10] sm:$0xff]
      %v341 = vld [vmem:[%s1 + $0x18] sm:$0xff]
      %v342 = vld [vmem:[%s1 + $0x20] sm:$0xff]
      %v343 = vld [vmem:[%s1 + $0x28] sm:$0xff]
      %v344 = vld [vmem:[%s1 + $0x30] sm:$0xff]
      %v345 = vld [vmem:[%s1 + $0x38] sm:$0xff]
      %347 = vset.pattern.permute.xlu0 0
      %348 = vperm.xlu0 %347, %v338
      %v349 = vpop.permute.xlu0 %348
      %352 = vset.pattern.permute.xlu0 0
      %353 = vperm.xlu0 %352, %v339
      %v354 = vpop.permute.xlu0 %353
      %357 = vset.pattern.permute.xlu0 0
      %358 = vperm.xlu0 %357, %v340
      %v359 = vpop.permute.xlu0 %358
      %362 = vset.pattern.permute.xlu0 0
      %363 = vperm.xlu0 %362, %v341
      %v364 = vpop.permute.xlu0 %363
      %367 = vset.pattern.permute.xlu0 0
      %368 = vperm.xlu0 %367, %v342
      %v369 = vpop.permute.xlu0 %368
      %372 = vset.pattern.permute.xlu0 0
      %373 = vperm.xlu0 %372, %v343
      %v374 = vpop.permute.xlu0 %373
      %377 = vset.pattern.permute.xlu0 0
      %378 = vperm.xlu0 %377, %v344
      %v379 = vpop.permute.xlu0 %378
      %382 = vset.pattern.permute.xlu0 0
      %383 = vperm.xlu0 %382, %v345
      %v384 = vpop.permute.xlu0 %383
      %v387 = vlaneseq
      %v388 = vshrl.u32 %v387, 7
      %v389 = vsub.s32 0, %v388
      %v390 = vrot.slane %v337, %v389
      %v391 = vlaneseq
      %v392 = vshrl.u32 %v391, 7
      %v393 = vsub.s32 4, %v392
      %v394 = vrot.slane %v337, %v393
      %v397 = vlaneseq
      %v398 = vshrl.u32 %v397, 7
      %v399 = vsub.s32 0, %v398
      %v400 = vrot.slane %v390, %v399
      %v401 = vlaneseq
      %v402 = vshrl.u32 %v401, 7
      %v403 = vsub.s32 0, %v402
      %v404 = vrot.slane %v394, %v403
      %v405 = vmul.f32 %v349, %v400
      %v406 = vmul.f32 %v349, %v404
      %v407 = vmul.f32 %v354, %v400
      %v408 = vmul.f32 %v354, %v404
      %v409 = vmul.f32 %v359, %v400
      %v410 = vmul.f32 %v359, %v404
      %v411 = vmul.f32 %v364, %v400
      %v412 = vmul.f32 %v364, %v404
      %v413 = vmul.f32 %v369, %v400
      %v414 = vmul.f32 %v369, %v404
      %v415 = vmul.f32 %v374, %v400
      %v416 = vmul.f32 %v374, %v404
      %v417 = vmul.f32 %v379, %v400
      %v418 = vmul.f32 %v379, %v404
      %v419 = vmul.f32 %v384, %v400
      %v420 = vmul.f32 %v384, %v404
      %v421 = vld [vmem:[%s2] sm:$0xff]
      %v422 = vld [vmem:[%s2 + $0x8] sm:$0xff]
      %v423 = vld [vmem:[%s2 + $0x10] sm:$0xff]
      %v424 = vld [vmem:[%s2 + $0x18] sm:$0xff]
      %v425 = vld [vmem:[%s2 + $0x20] sm:$0xff]
      %v426 = vld [vmem:[%s2 + $0x28] sm:$0xff]
      %v427 = vld [vmem:[%s2 + $0x30] sm:$0xff]
      %v428 = vld [vmem:[%s2 + $0x38] sm:$0xff]
      %430 = vset.pattern.permute.xlu0 0
      %431 = vperm.xlu0 %430, %v421
      %v432 = vpop.permute.xlu0 %431
      %435 = vset.pattern.permute.xlu0 0
      %436 = vperm.xlu0 %435, %v422
      %v437 = vpop.permute.xlu0 %436
      %440 = vset.pattern.permute.xlu0 0
      %441 = vperm.xlu0 %440, %v423
      %v442 = vpop.permute.xlu0 %441
      %445 = vset.pattern.permute.xlu0 0
      %446 = vperm.xlu0 %445, %v424
      %v447 = vpop.permute.xlu0 %446
      %450 = vset.pattern.permute.xlu0 0
      %451 = vperm.xlu0 %450, %v425
      %v452 = vpop.permute.xlu0 %451
      %455 = vset.pattern.permute.xlu0 0
      %456 = vperm.xlu0 %455, %v426
      %v457 = vpop.permute.xlu0 %456
      %460 = vset.pattern.permute.xlu0 0
      %461 = vperm.xlu0 %460, %v427
      %v462 = vpop.permute.xlu0 %461
      %465 = vset.pattern.permute.xlu0 0
      %466 = vperm.xlu0 %465, %v428
      %v467 = vpop.permute.xlu0 %466
      %v469 = vadd.f32 %v405, %v432
      %v470 = vadd.f32 %v406, %v432
      %v471 = vadd.f32 %v407, %v437
      %v472 = vadd.f32 %v408, %v437
      %v473 = vadd.f32 %v409, %v442
      %v474 = vadd.f32 %v410, %v442
      %v475 = vadd.f32 %v411, %v447
      %v476 = vadd.f32 %v412, %v447
      %v477 = vadd.f32 %v413, %v452
      %v478 = vadd.f32 %v414, %v452
      %v479 = vadd.f32 %v415, %v457
      %v480 = vadd.f32 %v416, %v457
      %v481 = vadd.f32 %v417, %v462
      %v482 = vadd.f32 %v418, %v462
      %v483 = vadd.f32 %v419, %v467
      %v484 = vadd.f32 %v420, %v467
      %485 = vset.pattern.permute.xlu0 1
      %486 = vperm.xlu0 %485, %v338
      %v487 = vpop.permute.xlu0 %486
      %489 = vset.pattern.permute.xlu0 1
      %490 = vperm.xlu0 %489, %v339
      %v491 = vpop.permute.xlu0 %490
      %493 = vset.pattern.permute.xlu0 1
      %494 = vperm.xlu0 %493, %v340
      %v495 = vpop.permute.xlu0 %494
      %497 = vset.pattern.permute.xlu0 1
      %498 = vperm.xlu0 %497, %v341
      %v499 = vpop.permute.xlu0 %498
      %501 = vset.pattern.permute.xlu0 1
      %502 = vperm.xlu0 %501, %v342
      %v503 = vpop.permute.xlu0 %502
      %505 = vset.pattern.permute.xlu0 1
      %506 = vperm.xlu0 %505, %v343
      %v507 = vpop.permute.xlu0 %506
      %509 = vset.pattern.permute.xlu0 1
      %510 = vperm.xlu0 %509, %v344
      %v511 = vpop.permute.xlu0 %510
      %513 = vset.pattern.permute.xlu0 1
      %514 = vperm.xlu0 %513, %v345
      %v515 = vpop.permute.xlu0 %514
      %v517 = vlaneseq
      %v518 = vshrl.u32 %v517, 7
      %v519 = vsub.s32 1, %v518
      %v520 = vrot.slane %v337, %v519
      %v521 = vlaneseq
      %v522 = vshrl.u32 %v521, 7
      %v523 = vsub.s32 5, %v522
      %v524 = vrot.slane %v337, %v523
      %v527 = vlaneseq
      %v528 = vshrl.u32 %v527, 7
      %v529 = vsub.s32 1, %v528
      %v530 = vrot.slane %v520, %v529
      %v531 = vlaneseq
      %v532 = vshrl.u32 %v531, 7
      %v533 = vsub.s32 1, %v532
      %v534 = vrot.slane %v524, %v533
      %v535 = vmul.f32 %v487, %v530
      %v536 = vmul.f32 %v487, %v534
      %v537 = vmul.f32 %v491, %v530
      %v538 = vmul.f32 %v491, %v534
      %v539 = vmul.f32 %v495, %v530
      %v540 = vmul.f32 %v495, %v534
      %v541 = vmul.f32 %v499, %v530
      %v542 = vmul.f32 %v499, %v534
      %v543 = vmul.f32 %v503, %v530
      %v544 = vmul.f32 %v503, %v534
      %v545 = vmul.f32 %v507, %v530
      %v546 = vmul.f32 %v507, %v534
      %v547 = vmul.f32 %v511, %v530
      %v548 = vmul.f32 %v511, %v534
      %v549 = vmul.f32 %v515, %v530
      %v550 = vmul.f32 %v515, %v534
      %v551 = vadd.f32 %v469, %v535
      %v552 = vadd.f32 %v470, %v536
      %v553 = vadd.f32 %v471, %v537
      %v554 = vadd.f32 %v472, %v538
      %v555 = vadd.f32 %v473, %v539
      %v556 = vadd.f32 %v474, %v540
      %v557 = vadd.f32 %v475, %v541
      %v558 = vadd.f32 %v476, %v542
      %v559 = vadd.f32 %v477, %v543
      %v560 = vadd.f32 %v478, %v544
      %v561 = vadd.f32 %v479, %v545
      %v562 = vadd.f32 %v480, %v546
      %v563 = vadd.f32 %v481, %v547
      %v564 = vadd.f32 %v482, %v548
      %v565 = vadd.f32 %v483, %v549
      %v566 = vadd.f32 %v484, %v550
      %567 = vset.pattern.permute.xlu0 2
      %568 = vperm.xlu0 %567, %v338
      %v569 = vpop.permute.xlu0 %568
      %571 = vset.pattern.permute.xlu0 2
      %572 = vperm.xlu0 %571, %v339
      %v573 = vpop.permute.xlu0 %572
      %575 = vset.pattern.permute.xlu0 2
      %576 = vperm.xlu0 %575, %v340
      %v577 = vpop.permute.xlu0 %576
      %579 = vset.pattern.permute.xlu0 2
      %580 = vperm.xlu0 %579, %v341
      %v581 = vpop.permute.xlu0 %580
      %583 = vset.pattern.permute.xlu0 2
      %584 = vperm.xlu0 %583, %v342
      %v585 = vpop.permute.xlu0 %584
      %587 = vset.pattern.permute.xlu0 2
      %588 = vperm.xlu0 %587, %v343
      %v589 = vpop.permute.xlu0 %588
      %591 = vset.pattern.permute.xlu0 2
      %592 = vperm.xlu0 %591, %v344
      %v593 = vpop.permute.xlu0 %592
      %595 = vset.pattern.permute.xlu0 2
      %596 = vperm.xlu0 %595, %v345
      %v597 = vpop.permute.xlu0 %596
      %v599 = vlaneseq
      %v600 = vshrl.u32 %v599, 7
      %v601 = vsub.s32 2, %v600
      %v602 = vrot.slane %v337, %v601
      %v603 = vlaneseq
      %v604 = vshrl.u32 %v603, 7
      %v605 = vsub.s32 6, %v604
      %v606 = vrot.slane %v337, %v605
      %v609 = vlaneseq
      %v610 = vshrl.u32 %v609, 7
      %v611 = vsub.s32 2, %v610
      %v612 = vrot.slane %v602, %v611
      %v613 = vlaneseq
      %v614 = vshrl.u32 %v613, 7
      %v615 = vsub.s32 2, %v614
      %v616 = vrot.slane %v606, %v615
      %v617 = vmul.f32 %v569, %v612
      %v618 = vmul.f32 %v569, %v616
      %v619 = vmul.f32 %v573, %v612
      %v620 = vmul.f32 %v573, %v616
      %v621 = vmul.f32 %v577, %v612
      %v622 = vmul.f32 %v577, %v616
      %v623 = vmul.f32 %v581, %v612
      %v624 = vmul.f32 %v581, %v616
      %v625 = vmul.f32 %v585, %v612
      %v626 = vmul.f32 %v585, %v616
      %v627 = vmul.f32 %v589, %v612
      %v628 = vmul.f32 %v589, %v616
      %v629 = vmul.f32 %v593, %v612
      %v630 = vmul.f32 %v593, %v616
      %v631 = vmul.f32 %v597, %v612
      %v632 = vmul.f32 %v597, %v616
      %v633 = vadd.f32 %v551, %v617
      %v634 = vadd.f32 %v552, %v618
      %v635 = vadd.f32 %v553, %v619
      %v636 = vadd.f32 %v554, %v620
      %v637 = vadd.f32 %v555, %v621
      %v638 = vadd.f32 %v556, %v622
      %v639 = vadd.f32 %v557, %v623
      %v640 = vadd.f32 %v558, %v624
      %v641 = vadd.f32 %v559, %v625
      %v642 = vadd.f32 %v560, %v626
      %v643 = vadd.f32 %v561, %v627
      %v644 = vadd.f32 %v562, %v628
      %v645 = vadd.f32 %v563, %v629
      %v646 = vadd.f32 %v564, %v630
      %v647 = vadd.f32 %v565, %v631
      %v648 = vadd.f32 %v566, %v632
      %v649 = vlaneseq
      %v650 = vshrl.u32 %v649, 7
      %v651 = vadd.s32 %v650, 8
      %v652 = vadd.s32 %v650, 16
      %v653 = vadd.s32 %v650, 24
      %v654 = vadd.s32 %v650, 32
      %v655 = vadd.s32 %v650, 40
      %v656 = vadd.s32 %v650, 48
      %v657 = vadd.s32 %v650, 56
      %vm658 = vcmp.lt.s32.totalorder %v650, 3
      %vm659 = vcmp.lt.s32.totalorder %v651, 3
      %vm660 = vcmp.lt.s32.totalorder %v652, 3
      %vm661 = vcmp.lt.s32.totalorder %v653, 3
      %vm662 = vcmp.lt.s32.totalorder %v654, 3
      %vm663 = vcmp.lt.s32.totalorder %v655, 3
      %vm664 = vcmp.lt.s32.totalorder %v656, 3
      %vm665 = vcmp.lt.s32.totalorder %v657, 3
      %v666 = vand.u32 2147483647, %v633
      %vm667 = vcmp.le.f32.partialorder %v666, 0.7853982
      %vm668 = vcmp.lt.s32.totalorder %v633, 0
      %v669 = vand.u32 %v633, 2139095040
      %v670 = vshrl.u32 %v669, 23
      %v671 = vsub.s32 %v670, 127
      %v672 = vand.u32 2147483647, %v633
      %v673 = vand.u32 %v672, 8388607
      %v674 = vor.u32 %v673, 8388608
      %v675 = vsub.s32 0, %v674
      %v676 = vadd.s32 %v671, 1
      %vm677 = vcmp.gt.s32.totalorder %v676, 0
      %v678 = vsel %vm677, %v676, 0
      %v679 = vshrl.u32 %v678, 5
      %v680 = vand.u32 %v678, 31
      %v681 = vsub.s32 32, %v680
      %v682 = vshrl.u32 683565275, %v681
      %v683 = vshll.u32 683565275, %v680
      %v684 = vshrl.u32 2475754826, %v681
      %v685 = vor.u32 %v683, %v684
      %v686 = vshll.u32 2475754826, %v680
      %v687 = vshrl.u32 2131351028, %v681
      %v688 = vor.u32 %v686, %v687
      %v689 = vshll.u32 2131351028, %v680
      %v690 = vshrl.u32 2102212464, %v681
      %v691 = vor.u32 %v689, %v690
      %v692 = vshll.u32 2102212464, %v680
      %v693 = vshrl.u32 920167782, %v681
      %v694 = vor.u32 %v692, %v693
      %v695 = vshll.u32 920167782, %v680
      %v696 = vshrl.u32 1326507024, %v681
      %v697 = vor.u32 %v695, %v696
      %vm698 = vcmp.lt.s32.totalorder %v679, 1
      %vm699 = vcmp.lt.s32.totalorder %v679, 2
      %vm700 = vcmp.lt.s32.totalorder %v679, 3
      %vm701 = vcmp.lt.s32.totalorder %v679, 4
      %v702 = vsel %vm698, %v682, %v685
      %v703 = vsel %vm701, %v691, 2102212464
      %v704 = vsel %vm700, %v688, %v703
      %v705 = vsel %vm699, %v702, %v704
      %v706 = vsel %vm698, %v685, %v688
      %v707 = vsel %vm701, %v694, 920167782
      %v708 = vsel %vm700, %v691, %v707
      %v709 = vsel %vm699, %v706, %v708
      %v710 = vsel %vm698, %v688, %v691
      %v711 = vsel %vm701, %v697, 1326507024
      %v712 = vsel %vm700, %v694, %v711
      %v713 = vsel %vm699, %v710, %v712
      %v714 = vshll.u32 %v674, 8
      %v715 = vmul.u32.u64.compose %v714, %v713
      %v716 = vextract.low.u32 %v715
      %v717 = vextract.high.u32 %v715
      %v718 = vmul.u32.u64.compose %v714, %v709
      %v719 = vextract.low.u32 %v718
      %v720 = vextract.high.u32 %v718
      %v721 = vmul.u32 %v714, %v705
      %v722 = vadd.s32 %v717, %v719
      %vm723 = vc.u32 %v717, %v719
      %v724 = vadd.s32 %v720, 1
      %v725 = vsel %vm723, %v724, %v720
      %v726 = vadd.s32 %v721, %v725
      %v727 = vadd.s32 %v726, 536870912
      %v728 = vshrl.u32 %v727, 30
      %v729 = vshll.u32 %v728, 30
      %v730 = vsub.s32 %v726, %v729
      %vm731 = vcmp.lt.s32.totalorder %v730, 0
      %v732 = vsub.s32 0, %v730
      %v733 = vsel %vm731, %v732, %v730
      %v734 = vclz %v733
      %v735 = vsub.s32 %v734, 2
      %vm736 = vcmp.gt.s32.totalorder 0, %v735
      %v737 = vsel %vm736, 0, %v735
      %v738 = vsub.s32 32, %v737
      %v739 = vshll.u32 %v730, %v737
      %v740 = vshrl.u32 %v722, %v738
      %v741 = vor.u32 %v739, %v740
      %v742 = vsub.s32 4294967266, %v737
      %v743 = vadd.s32 %v742, 127
      %v744 = vshll.u32 %v743, 23
      %v745 = vor.u32 4788187, %v744
      %v746 = vand.u32 2147483647, %v745
      %v748 = vcvt.s32.f32 %v741
      %v749 = vmul.f32 %v748, %v746
      %v750 = vxor.u32 %v749, 2147483648
      %v751 = vsel %vm668, %v750, %v749
      %v752 = vsub.s32 4, %v728
      %v753 = vsel %vm668, %v752, %v728
      %v754 = vsel %vm667, %v633, %v751
      %v755 = vsel %vm667, 0, %v753
      %v756 = vcosq.f32.pop %v754
      %v757 = vsinq.f32.pop %v754
      %vm758 = vweird.f32 %v633
      %v759 = vadd.s32 %v755, 3
      %v760 = vand.u32 %v759, 3
      %vm761 = vcmp.lt.s32.totalorder %v760, 2
      %vm762 = vcmp.eq.s32.totalorder %v760, 0
      %v763 = vxor.u32 %v757, 2147483648
      %v764 = vsel %vm762, %v756, %v763
      %vm765 = vcmp.eq.s32.totalorder %v760, 2
      %v766 = vxor.u32 %v756, 2147483648
      %v767 = vsel %vm765, %v766, %v757
      %v768 = vsel %vm761, %v764, %v767
      %v769 = vsel %vm758, nan, %v768
      %v770 = vand.u32 2147483647, %v634
      %vm771 = vcmp.le.f32.partialorder %v770, 0.7853982
      %vm772 = vcmp.lt.s32.totalorder %v634, 0
      %v773 = vand.u32 %v634, 2139095040
      %v774 = vshrl.u32 %v773, 23
      %v775 = vsub.s32 %v774, 127
      %v776 = vand.u32 2147483647, %v634
      %v777 = vand.u32 %v776, 8388607
      %v778 = vor.u32 %v777, 8388608
      %v779 = vsub.s32 0, %v778
      %v780 = vadd.s32 %v775, 1
      %vm781 = vcmp.gt.s32.totalorder %v780, 0
      %v782 = vsel %vm781, %v780, 0
      %v783 = vshrl.u32 %v782, 5
      %v784 = vand.u32 %v782, 31
      %v785 = vsub.s32 32, %v784
      %v786 = vshrl.u32 683565275, %v785
      %v787 = vshll.u32 683565275, %v784
      %v788 = vshrl.u32 2475754826, %v785
      %v789 = vor.u32 %v787, %v788
      %v790 = vshll.u32 2475754826, %v784
      %v791 = vshrl.u32 2131351028, %v785
      %v792 = vor.u32 %v790, %v791
      %v793 = vshll.u32 2131351028, %v784
      %v794 = vshrl.u32 2102212464, %v785
      %v795 = vor.u32 %v793, %v794
      %v796 = vshll.u32 2102212464, %v784
      %v797 = vshrl.u32 920167782, %v785
      %v798 = vor.u32 %v796, %v797
      %v799 = vshll.u32 920167782, %v784
      %v800 = vshrl.u32 1326507024, %v785
      %v801 = vor.u32 %v799, %v800
      %vm802 = vcmp.lt.s32.totalorder %v783, 1
      %vm803 = vcmp.lt.s32.totalorder %v783, 2
      %vm804 = vcmp.lt.s32.totalorder %v783, 3
      %vm805 = vcmp.lt.s32.totalorder %v783, 4
      %v806 = vsel %vm802, %v786, %v789
      %v807 = vsel %vm805, %v795, 2102212464
      %v808 = vsel %vm804, %v792, %v807
      %v809 = vsel %vm803, %v806, %v808
      %v810 = vsel %vm802, %v789, %v792
      %v811 = vsel %vm805, %v798, 920167782
      %v812 = vsel %vm804, %v795, %v811
      %v813 = vsel %vm803, %v810, %v812
      %v814 = vsel %vm802, %v792, %v795
      %v815 = vsel %vm805, %v801, 1326507024
      %v816 = vsel %vm804, %v798, %v815
      %v817 = vsel %vm803, %v814, %v816
      %v818 = vshll.u32 %v778, 8
      %v819 = vmul.u32.u64.compose %v818, %v817
      %v820 = vextract.low.u32 %v819
      %v821 = vextract.high.u32 %v819
      %v822 = vmul.u32.u64.compose %v818, %v813
      %v823 = vextract.low.u32 %v822
      %v824 = vextract.high.u32 %v822
      %v825 = vmul.u32 %v818, %v809
      %v826 = vadd.s32 %v821, %v823
      %vm827 = vc.u32 %v821, %v823
      %v828 = vadd.s32 %v824, 1
      %v829 = vsel %vm827, %v828, %v824
      %v830 = vadd.s32 %v825, %v829
      %v831 = vadd.s32 %v830, 536870912
      %v832 = vshrl.u32 %v831, 30
      %v833 = vshll.u32 %v832, 30
      %v834 = vsub.s32 %v830, %v833
      %vm835 = vcmp.lt.s32.totalorder %v834, 0
      %v836 = vsub.s32 0, %v834
      %v837 = vsel %vm835, %v836, %v834
      %v838 = vclz %v837
      %v839 = vsub.s32 %v838, 2
      %vm840 = vcmp.gt.s32.totalorder 0, %v839
      %v841 = vsel %vm840, 0, %v839
      %v842 = vsub.s32 32, %v841
      %v843 = vshll.u32 %v834, %v841
      %v844 = vshrl.u32 %v826, %v842
      %v845 = vor.u32 %v843, %v844
      %v846 = vsub.s32 4294967266, %v841
      %v847 = vadd.s32 %v846, 127
      %v848 = vshll.u32 %v847, 23
      %v849 = vor.u32 4788187, %v848
      %v850 = vand.u32 2147483647, %v849
      %v852 = vcvt.s32.f32 %v845
      %v853 = vmul.f32 %v852, %v850
      %v854 = vxor.u32 %v853, 2147483648
      %v855 = vsel %vm772, %v854, %v853
      %v856 = vsub.s32 4, %v832
      %v857 = vsel %vm772, %v856, %v832
      %v858 = vsel %vm771, %v634, %v855
      %v859 = vsel %vm771, 0, %v857
      %v860 = vcosq.f32.pop %v858
      %v861 = vsinq.f32.pop %v858
      %vm862 = vweird.f32 %v634
      %v863 = vadd.s32 %v859, 3
      %v864 = vand.u32 %v863, 3
      %vm865 = vcmp.lt.s32.totalorder %v864, 2
      %vm866 = vcmp.eq.s32.totalorder %v864, 0
      %v867 = vxor.u32 %v861, 2147483648
      %v868 = vsel %vm866, %v860, %v867
      %vm869 = vcmp.eq.s32.totalorder %v864, 2
      %v870 = vxor.u32 %v860, 2147483648
      %v871 = vsel %vm869, %v870, %v861
      %v872 = vsel %vm865, %v868, %v871
      %v873 = vsel %vm862, nan, %v872
      %v874 = vand.u32 2147483647, %v635
      %vm875 = vcmp.le.f32.partialorder %v874, 0.7853982
      %vm876 = vcmp.lt.s32.totalorder %v635, 0
      %v877 = vand.u32 %v635, 2139095040
      %v878 = vshrl.u32 %v877, 23
      %v879 = vsub.s32 %v878, 127
      %v880 = vand.u32 2147483647, %v635
      %v881 = vand.u32 %v880, 8388607
      %v882 = vor.u32 %v881, 8388608
      %v883 = vsub.s32 0, %v882
      %v884 = vadd.s32 %v879, 1
      %vm885 = vcmp.gt.s32.totalorder %v884, 0
      %v886 = vsel %vm885, %v884, 0
      %v887 = vshrl.u32 %v886, 5
      %v888 = vand.u32 %v886, 31
      %v889 = vsub.s32 32, %v888
      %v890 = vshrl.u32 683565275, %v889
      %v891 = vshll.u32 683565275, %v888
      %v892 = vshrl.u32 2475754826, %v889
      %v893 = vor.u32 %v891, %v892
      %v894 = vshll.u32 2475754826, %v888
      %v895 = vshrl.u32 2131351028, %v889
      %v896 = vor.u32 %v894, %v895
      %v897 = vshll.u32 2131351028, %v888
      %v898 = vshrl.u32 2102212464, %v889
      %v899 = vor.u32 %v897, %v898
      %v900 = vshll.u32 2102212464, %v888
      %v901 = vshrl.u32 920167782, %v889
      %v902 = vor.u32 %v900, %v901
      %v903 = vshll.u32 920167782, %v888
      %v904 = vshrl.u32 1326507024, %v889
      %v905 = vor.u32 %v903, %v904
      %vm906 = vcmp.lt.s32.totalorder %v887, 1
      %vm907 = vcmp.lt.s32.totalorder %v887, 2
      %vm908 = vcmp.lt.s32.totalorder %v887, 3
      %vm909 = vcmp.lt.s32.totalorder %v887, 4
      %v910 = vsel %vm906, %v890, %v893
      %v911 = vsel %vm909, %v899, 2102212464
      %v912 = vsel %vm908, %v896, %v911
      %v913 = vsel %vm907, %v910, %v912
      %v914 = vsel %vm906, %v893, %v896
      %v915 = vsel %vm909, %v902, 920167782
      %v916 = vsel %vm908, %v899, %v915
      %v917 = vsel %vm907, %v914, %v916
      %v918 = vsel %vm906, %v896, %v899
      %v919 = vsel %vm909, %v905, 1326507024
      %v920 = vsel %vm908, %v902, %v919
      %v921 = vsel %vm907, %v918, %v920
      %v922 = vshll.u32 %v882, 8
      %v923 = vmul.u32.u64.compose %v922, %v921
      %v924 = vextract.low.u32 %v923
      %v925 = vextract.high.u32 %v923
      %v926 = vmul.u32.u64.compose %v922, %v917
      %v927 = vextract.low.u32 %v926
      %v928 = vextract.high.u32 %v926
      %v929 = vmul.u32 %v922, %v913
      %v930 = vadd.s32 %v925, %v927
      %vm931 = vc.u32 %v925, %v927
      %v932 = vadd.s32 %v928, 1
      %v933 = vsel %vm931, %v932, %v928
      %v934 = vadd.s32 %v929, %v933
      %v935 = vadd.s32 %v934, 536870912
      %v936 = vshrl.u32 %v935, 30
      %v937 = vshll.u32 %v936, 30
      %v938 = vsub.s32 %v934, %v937
      %vm939 = vcmp.lt.s32.totalorder %v938, 0
      %v940 = vsub.s32 0, %v938
      %v941 = vsel %vm939, %v940, %v938
      %v942 = vclz %v941
      %v943 = vsub.s32 %v942, 2
      %vm944 = vcmp.gt.s32.totalorder 0, %v943
      %v945 = vsel %vm944, 0, %v943
      %v946 = vsub.s32 32, %v945
      %v947 = vshll.u32 %v938, %v945
      %v948 = vshrl.u32 %v930, %v946
      %v949 = vor.u32 %v947, %v948
      %v950 = vsub.s32 4294967266, %v945
      %v951 = vadd.s32 %v950, 127
      %v952 = vshll.u32 %v951, 23
      %v953 = vor.u32 4788187, %v952
      %v954 = vand.u32 2147483647, %v953
      %v956 = vcvt.s32.f32 %v949
      %v957 = vmul.f32 %v956, %v954
      %v958 = vxor.u32 %v957, 2147483648
      %v959 = vsel %vm876, %v958, %v957
      %v960 = vsub.s32 4, %v936
      %v961 = vsel %vm876, %v960, %v936
      %v962 = vsel %vm875, %v635, %v959
      %v963 = vsel %vm875, 0, %v961
      %v964 = vcosq.f32.pop %v962
      %v965 = vsinq.f32.pop %v962
      %vm966 = vweird.f32 %v635
      %v967 = vadd.s32 %v963, 3
      %v968 = vand.u32 %v967, 3
      %vm969 = vcmp.lt.s32.totalorder %v968, 2
      %vm970 = vcmp.eq.s32.totalorder %v968, 0
      %v971 = vxor.u32 %v965, 2147483648
      %v972 = vsel %vm970, %v964, %v971
      %vm973 = vcmp.eq.s32.totalorder %v968, 2
      %v974 = vxor.u32 %v964, 2147483648
      %v975 = vsel %vm973, %v974, %v965
      %v976 = vsel %vm969, %v972, %v975
      %v977 = vsel %vm966, nan, %v976
      %v978 = vand.u32 2147483647, %v636
      %vm979 = vcmp.le.f32.partialorder %v978, 0.7853982
      %vm980 = vcmp.lt.s32.totalorder %v636, 0
      %v981 = vand.u32 %v636, 2139095040
      %v982 = vshrl.u32 %v981, 23
      %v983 = vsub.s32 %v982, 127
      %v984 = vand.u32 2147483647, %v636
      %v985 = vand.u32 %v984, 8388607
      %v986 = vor.u32 %v985, 8388608
      %v987 = vsub.s32 0, %v986
      %v988 = vadd.s32 %v983, 1
      %vm989 = vcmp.gt.s32.totalorder %v988, 0
      %v990 = vsel %vm989, %v988, 0
      %v991 = vshrl.u32 %v990, 5
      %v992 = vand.u32 %v990, 31
      %v993 = vsub.s32 32, %v992
      %v994 = vshrl.u32 683565275, %v993
      %v995 = vshll.u32 683565275, %v992
      %v996 = vshrl.u32 2475754826, %v993
      %v997 = vor.u32 %v995, %v996
      %v998 = vshll.u32 2475754826, %v992
      %v999 = vshrl.u32 2131351028, %v993
      %v1000 = vor.u32 %v998, %v999
      %v1001 = vshll.u32 2131351028, %v992
      %v1002 = vshrl.u32 2102212464, %v993
      %v1003 = vor.u32 %v1001, %v1002
      %v1004 = vshll.u32 2102212464, %v992
      %v1005 = vshrl.u32 920167782, %v993
      %v1006 = vor.u32 %v1004, %v1005
      %v1007 = vshll.u32 920167782, %v992
      %v1008 = vshrl.u32 1326507024, %v993
      %v1009 = vor.u32 %v1007, %v1008
      %vm1010 = vcmp.lt.s32.totalorder %v991, 1
      %vm1011 = vcmp.lt.s32.totalorder %v991, 2
      %vm1012 = vcmp.lt.s32.totalorder %v991, 3
      %vm1013 = vcmp.lt.s32.totalorder %v991, 4
      %v1014 = vsel %vm1010, %v994, %v997
      %v1015 = vsel %vm1013, %v1003, 2102212464
      %v1016 = vsel %vm1012, %v1000, %v1015
      %v1017 = vsel %vm1011, %v1014, %v1016
      %v1018 = vsel %vm1010, %v997, %v1000
      %v1019 = vsel %vm1013, %v1006, 920167782
      %v1020 = vsel %vm1012, %v1003, %v1019
      %v1021 = vsel %vm1011, %v1018, %v1020
      %v1022 = vsel %vm1010, %v1000, %v1003
      %v1023 = vsel %vm1013, %v1009, 1326507024
      %v1024 = vsel %vm1012, %v1006, %v1023
      %v1025 = vsel %vm1011, %v1022, %v1024
      %v1026 = vshll.u32 %v986, 8
      %v1027 = vmul.u32.u64.compose %v1026, %v1025
      %v1028 = vextract.low.u32 %v1027
      %v1029 = vextract.high.u32 %v1027
      %v1030 = vmul.u32.u64.compose %v1026, %v1021
      %v1031 = vextract.low.u32 %v1030
      %v1032 = vextract.high.u32 %v1030
      %v1033 = vmul.u32 %v1026, %v1017
      %v1034 = vadd.s32 %v1029, %v1031
      %vm1035 = vc.u32 %v1029, %v1031
      %v1036 = vadd.s32 %v1032, 1
      %v1037 = vsel %vm1035, %v1036, %v1032
      %v1038 = vadd.s32 %v1033, %v1037
      %v1039 = vadd.s32 %v1038, 536870912
      %v1040 = vshrl.u32 %v1039, 30
      %v1041 = vshll.u32 %v1040, 30
      %v1042 = vsub.s32 %v1038, %v1041
      %vm1043 = vcmp.lt.s32.totalorder %v1042, 0
      %v1044 = vsub.s32 0, %v1042
      %v1045 = vsel %vm1043, %v1044, %v1042
      %v1046 = vclz %v1045
      %v1047 = vsub.s32 %v1046, 2
      %vm1048 = vcmp.gt.s32.totalorder 0, %v1047
      %v1049 = vsel %vm1048, 0, %v1047
      %v1050 = vsub.s32 32, %v1049
      %v1051 = vshll.u32 %v1042, %v1049
      %v1052 = vshrl.u32 %v1034, %v1050
      %v1053 = vor.u32 %v1051, %v1052
      %v1054 = vsub.s32 4294967266, %v1049
      %v1055 = vadd.s32 %v1054, 127
      %v1056 = vshll.u32 %v1055, 23
      %v1057 = vor.u32 4788187, %v1056
      %v1058 = vand.u32 2147483647, %v1057
      %v1060 = vcvt.s32.f32 %v1053
      %v1061 = vmul.f32 %v1060, %v1058
      %v1062 = vxor.u32 %v1061, 2147483648
      %v1063 = vsel %vm980, %v1062, %v1061
      %v1064 = vsub.s32 4, %v1040
      %v1065 = vsel %vm980, %v1064, %v1040
      %v1066 = vsel %vm979, %v636, %v1063
      %v1067 = vsel %vm979, 0, %v1065
      %v1068 = vcosq.f32.pop %v1066
      %v1069 = vsinq.f32.pop %v1066
      %vm1070 = vweird.f32 %v636
      %v1071 = vadd.s32 %v1067, 3
      %v1072 = vand.u32 %v1071, 3
      %vm1073 = vcmp.lt.s32.totalorder %v1072, 2
      %vm1074 = vcmp.eq.s32.totalorder %v1072, 0
      %v1075 = vxor.u32 %v1069, 2147483648
      %v1076 = vsel %vm1074, %v1068, %v1075
      %vm1077 = vcmp.eq.s32.totalorder %v1072, 2
      %v1078 = vxor.u32 %v1068, 2147483648
      %v1079 = vsel %vm1077, %v1078, %v1069
      %v1080 = vsel %vm1073, %v1076, %v1079
      %v1081 = vsel %vm1070, nan, %v1080
      %v1082 = vand.u32 2147483647, %v637
      %vm1083 = vcmp.le.f32.partialorder %v1082, 0.7853982
      %vm1084 = vcmp.lt.s32.totalorder %v637, 0
      %v1085 = vand.u32 %v637, 2139095040
      %v1086 = vshrl.u32 %v1085, 23
      %v1087 = vsub.s32 %v1086, 127
      %v1088 = vand.u32 2147483647, %v637
      %v1089 = vand.u32 %v1088, 8388607
      %v1090 = vor.u32 %v1089, 8388608
      %v1091 = vsub.s32 0, %v1090
      %v1092 = vadd.s32 %v1087, 1
      %vm1093 = vcmp.gt.s32.totalorder %v1092, 0
      %v1094 = vsel %vm1093, %v1092, 0
      %v1095 = vshrl.u32 %v1094, 5
      %v1096 = vand.u32 %v1094, 31
      %v1097 = vsub.s32 32, %v1096
      %v1098 = vshrl.u32 683565275, %v1097
      %v1099 = vshll.u32 683565275, %v1096
      %v1100 = vshrl.u32 2475754826, %v1097
      %v1101 = vor.u32 %v1099, %v1100
      %v1102 = vshll.u32 2475754826, %v1096
      %v1103 = vshrl.u32 2131351028, %v1097
      %v1104 = vor.u32 %v1102, %v1103
      %v1105 = vshll.u32 2131351028, %v1096
      %v1106 = vshrl.u32 2102212464, %v1097
      %v1107 = vor.u32 %v1105, %v1106
      %v1108 = vshll.u32 2102212464, %v1096
      %v1109 = vshrl.u32 920167782, %v1097
      %v1110 = vor.u32 %v1108, %v1109
      %v1111 = vshll.u32 920167782, %v1096
      %v1112 = vshrl.u32 1326507024, %v1097
      %v1113 = vor.u32 %v1111, %v1112
      %vm1114 = vcmp.lt.s32.totalorder %v1095, 1
      %vm1115 = vcmp.lt.s32.totalorder %v1095, 2
      %vm1116 = vcmp.lt.s32.totalorder %v1095, 3
      %vm1117 = vcmp.lt.s32.totalorder %v1095, 4
      %v1118 = vsel %vm1114, %v1098, %v1101
      %v1119 = vsel %vm1117, %v1107, 2102212464
      %v1120 = vsel %vm1116, %v1104, %v1119
      %v1121 = vsel %vm1115, %v1118, %v1120
      %v1122 = vsel %vm1114, %v1101, %v1104
      %v1123 = vsel %vm1117, %v1110, 920167782
      %v1124 = vsel %vm1116, %v1107, %v1123
      %v1125 = vsel %vm1115, %v1122, %v1124
      %v1126 = vsel %vm1114, %v1104, %v1107
      %v1127 = vsel %vm1117, %v1113, 1326507024
      %v1128 = vsel %vm1116, %v1110, %v1127
      %v1129 = vsel %vm1115, %v1126, %v1128
      %v1130 = vshll.u32 %v1090, 8
      %v1131 = vmul.u32.u64.compose %v1130, %v1129
      %v1132 = vextract.low.u32 %v1131
      %v1133 = vextract.high.u32 %v1131
      %v1134 = vmul.u32.u64.compose %v1130, %v1125
      %v1135 = vextract.low.u32 %v1134
      %v1136 = vextract.high.u32 %v1134
      %v1137 = vmul.u32 %v1130, %v1121
      %v1138 = vadd.s32 %v1133, %v1135
      %vm1139 = vc.u32 %v1133, %v1135
      %v1140 = vadd.s32 %v1136, 1
      %v1141 = vsel %vm1139, %v1140, %v1136
      %v1142 = vadd.s32 %v1137, %v1141
      %v1143 = vadd.s32 %v1142, 536870912
      %v1144 = vshrl.u32 %v1143, 30
      %v1145 = vshll.u32 %v1144, 30
      %v1146 = vsub.s32 %v1142, %v1145
      %vm1147 = vcmp.lt.s32.totalorder %v1146, 0
      %v1148 = vsub.s32 0, %v1146
      %v1149 = vsel %vm1147, %v1148, %v1146
      %v1150 = vclz %v1149
      %v1151 = vsub.s32 %v1150, 2
      %vm1152 = vcmp.gt.s32.totalorder 0, %v1151
      %v1153 = vsel %vm1152, 0, %v1151
      %v1154 = vsub.s32 32, %v1153
      %v1155 = vshll.u32 %v1146, %v1153
      %v1156 = vshrl.u32 %v1138, %v1154
      %v1157 = vor.u32 %v1155, %v1156
      %v1158 = vsub.s32 4294967266, %v1153
      %v1159 = vadd.s32 %v1158, 127
      %v1160 = vshll.u32 %v1159, 23
      %v1161 = vor.u32 4788187, %v1160
      %v1162 = vand.u32 2147483647, %v1161
      %v1164 = vcvt.s32.f32 %v1157
      %v1165 = vmul.f32 %v1164, %v1162
      %v1166 = vxor.u32 %v1165, 2147483648
      %v1167 = vsel %vm1084, %v1166, %v1165
      %v1168 = vsub.s32 4, %v1144
      %v1169 = vsel %vm1084, %v1168, %v1144
      %v1170 = vsel %vm1083, %v637, %v1167
      %v1171 = vsel %vm1083, 0, %v1169
      %v1172 = vcosq.f32.pop %v1170
      %v1173 = vsinq.f32.pop %v1170
      %vm1174 = vweird.f32 %v637
      %v1175 = vadd.s32 %v1171, 3
      %v1176 = vand.u32 %v1175, 3
      %vm1177 = vcmp.lt.s32.totalorder %v1176, 2
      %vm1178 = vcmp.eq.s32.totalorder %v1176, 0
      %v1179 = vxor.u32 %v1173, 2147483648
      %v1180 = vsel %vm1178, %v1172, %v1179
      %vm1181 = vcmp.eq.s32.totalorder %v1176, 2
      %v1182 = vxor.u32 %v1172, 2147483648
      %v1183 = vsel %vm1181, %v1182, %v1173
      %v1184 = vsel %vm1177, %v1180, %v1183
      %v1185 = vsel %vm1174, nan, %v1184
      %v1186 = vand.u32 2147483647, %v638
      %vm1187 = vcmp.le.f32.partialorder %v1186, 0.7853982
      %vm1188 = vcmp.lt.s32.totalorder %v638, 0
      %v1189 = vand.u32 %v638, 2139095040
      %v1190 = vshrl.u32 %v1189, 23
      %v1191 = vsub.s32 %v1190, 127
      %v1192 = vand.u32 2147483647, %v638
      %v1193 = vand.u32 %v1192, 8388607
      %v1194 = vor.u32 %v1193, 8388608
      %v1195 = vsub.s32 0, %v1194
      %v1196 = vadd.s32 %v1191, 1
      %vm1197 = vcmp.gt.s32.totalorder %v1196, 0
      %v1198 = vsel %vm1197, %v1196, 0
      %v1199 = vshrl.u32 %v1198, 5
      %v1200 = vand.u32 %v1198, 31
      %v1201 = vsub.s32 32, %v1200
      %v1202 = vshrl.u32 683565275, %v1201
      %v1203 = vshll.u32 683565275, %v1200
      %v1204 = vshrl.u32 2475754826, %v1201
      %v1205 = vor.u32 %v1203, %v1204
      %v1206 = vshll.u32 2475754826, %v1200
      %v1207 = vshrl.u32 2131351028, %v1201
      %v1208 = vor.u32 %v1206, %v1207
      %v1209 = vshll.u32 2131351028, %v1200
      %v1210 = vshrl.u32 2102212464, %v1201
      %v1211 = vor.u32 %v1209, %v1210
      %v1212 = vshll.u32 2102212464, %v1200
      %v1213 = vshrl.u32 920167782, %v1201
      %v1214 = vor.u32 %v1212, %v1213
      %v1215 = vshll.u32 920167782, %v1200
      %v1216 = vshrl.u32 1326507024, %v1201
      %v1217 = vor.u32 %v1215, %v1216
      %vm1218 = vcmp.lt.s32.totalorder %v1199, 1
      %vm1219 = vcmp.lt.s32.totalorder %v1199, 2
      %vm1220 = vcmp.lt.s32.totalorder %v1199, 3
      %vm1221 = vcmp.lt.s32.totalorder %v1199, 4
      %v1222 = vsel %vm1218, %v1202, %v1205
      %v1223 = vsel %vm1221, %v1211, 2102212464
      %v1224 = vsel %vm1220, %v1208, %v1223
      %v1225 = vsel %vm1219, %v1222, %v1224
      %v1226 = vsel %vm1218, %v1205, %v1208
      %v1227 = vsel %vm1221, %v1214, 920167782
      %v1228 = vsel %vm1220, %v1211, %v1227
      %v1229 = vsel %vm1219, %v1226, %v1228
      %v1230 = vsel %vm1218, %v1208, %v1211
      %v1231 = vsel %vm1221, %v1217, 1326507024
      %v1232 = vsel %vm1220, %v1214, %v1231
      %v1233 = vsel %vm1219, %v1230, %v1232
      %v1234 = vshll.u32 %v1194, 8
      %v1235 = vmul.u32.u64.compose %v1234, %v1233
      %v1236 = vextract.low.u32 %v1235
      %v1237 = vextract.high.u32 %v1235
      %v1238 = vmul.u32.u64.compose %v1234, %v1229
      %v1239 = vextract.low.u32 %v1238
      %v1240 = vextract.high.u32 %v1238
      %v1241 = vmul.u32 %v1234, %v1225
      %v1242 = vadd.s32 %v1237, %v1239
      %vm1243 = vc.u32 %v1237, %v1239
      %v1244 = vadd.s32 %v1240, 1
      %v1245 = vsel %vm1243, %v1244, %v1240
      %v1246 = vadd.s32 %v1241, %v1245
      %v1247 = vadd.s32 %v1246, 536870912
      %v1248 = vshrl.u32 %v1247, 30
      %v1249 = vshll.u32 %v1248, 30
      %v1250 = vsub.s32 %v1246, %v1249
      %vm1251 = vcmp.lt.s32.totalorder %v1250, 0
      %v1252 = vsub.s32 0, %v1250
      %v1253 = vsel %vm1251, %v1252, %v1250
      %v1254 = vclz %v1253
      %v1255 = vsub.s32 %v1254, 2
      %vm1256 = vcmp.gt.s32.totalorder 0, %v1255
      %v1257 = vsel %vm1256, 0, %v1255
      %v1258 = vsub.s32 32, %v1257
      %v1259 = vshll.u32 %v1250, %v1257
      %v1260 = vshrl.u32 %v1242, %v1258
      %v1261 = vor.u32 %v1259, %v1260
      %v1262 = vsub.s32 4294967266, %v1257
      %v1263 = vadd.s32 %v1262, 127
      %v1264 = vshll.u32 %v1263, 23
      %v1265 = vor.u32 4788187, %v1264
      %v1266 = vand.u32 2147483647, %v1265
      %v1268 = vcvt.s32.f32 %v1261
      %v1269 = vmul.f32 %v1268, %v1266
      %v1270 = vxor.u32 %v1269, 2147483648
      %v1271 = vsel %vm1188, %v1270, %v1269
      %v1272 = vsub.s32 4, %v1248
      %v1273 = vsel %vm1188, %v1272, %v1248
      %v1274 = vsel %vm1187, %v638, %v1271
      %v1275 = vsel %vm1187, 0, %v1273
      %v1276 = vcosq.f32.pop %v1274
      %v1277 = vsinq.f32.pop %v1274
      %vm1278 = vweird.f32 %v638
      %v1279 = vadd.s32 %v1275, 3
      %v1280 = vand.u32 %v1279, 3
      %vm1281 = vcmp.lt.s32.totalorder %v1280, 2
      %vm1282 = vcmp.eq.s32.totalorder %v1280, 0
      %v1283 = vxor.u32 %v1277, 2147483648
      %v1284 = vsel %vm1282, %v1276, %v1283
      %vm1285 = vcmp.eq.s32.totalorder %v1280, 2
      %v1286 = vxor.u32 %v1276, 2147483648
      %v1287 = vsel %vm1285, %v1286, %v1277
      %v1288 = vsel %vm1281, %v1284, %v1287
      %v1289 = vsel %vm1278, nan, %v1288
      %v1290 = vand.u32 2147483647, %v639
      %vm1291 = vcmp.le.f32.partialorder %v1290, 0.7853982
      %vm1292 = vcmp.lt.s32.totalorder %v639, 0
      %v1293 = vand.u32 %v639, 2139095040
      %v1294 = vshrl.u32 %v1293, 23
      %v1295 = vsub.s32 %v1294, 127
      %v1296 = vand.u32 2147483647, %v639
      %v1297 = vand.u32 %v1296, 8388607
      %v1298 = vor.u32 %v1297, 8388608
      %v1299 = vsub.s32 0, %v1298
      %v1300 = vadd.s32 %v1295, 1
      %vm1301 = vcmp.gt.s32.totalorder %v1300, 0
      %v1302 = vsel %vm1301, %v1300, 0
      %v1303 = vshrl.u32 %v1302, 5
      %v1304 = vand.u32 %v1302, 31
      %v1305 = vsub.s32 32, %v1304
      %v1306 = vshrl.u32 683565275, %v1305
      %v1307 = vshll.u32 683565275, %v1304
      %v1308 = vshrl.u32 2475754826, %v1305
      %v1309 = vor.u32 %v1307, %v1308
      %v1310 = vshll.u32 2475754826, %v1304
      %v1311 = vshrl.u32 2131351028, %v1305
      %v1312 = vor.u32 %v1310, %v1311
      %v1313 = vshll.u32 2131351028, %v1304
      %v1314 = vshrl.u32 2102212464, %v1305
      %v1315 = vor.u32 %v1313, %v1314
      %v1316 = vshll.u32 2102212464, %v1304
      %v1317 = vshrl.u32 920167782, %v1305
      %v1318 = vor.u32 %v1316, %v1317
      %v1319 = vshll.u32 920167782, %v1304
      %v1320 = vshrl.u32 1326507024, %v1305
      %v1321 = vor.u32 %v1319, %v1320
      %vm1322 = vcmp.lt.s32.totalorder %v1303, 1
      %vm1323 = vcmp.lt.s32.totalorder %v1303, 2
      %vm1324 = vcmp.lt.s32.totalorder %v1303, 3
      %vm1325 = vcmp.lt.s32.totalorder %v1303, 4
      %v1326 = vsel %vm1322, %v1306, %v1309
      %v1327 = vsel %vm1325, %v1315, 2102212464
      %v1328 = vsel %vm1324, %v1312, %v1327
      %v1329 = vsel %vm1323, %v1326, %v1328
      %v1330 = vsel %vm1322, %v1309, %v1312
      %v1331 = vsel %vm1325, %v1318, 920167782
      %v1332 = vsel %vm1324, %v1315, %v1331
      %v1333 = vsel %vm1323, %v1330, %v1332
      %v1334 = vsel %vm1322, %v1312, %v1315
      %v1335 = vsel %vm1325, %v1321, 1326507024
      %v1336 = vsel %vm1324, %v1318, %v1335
      %v1337 = vsel %vm1323, %v1334, %v1336
      %v1338 = vshll.u32 %v1298, 8
      %v1339 = vmul.u32.u64.compose %v1338, %v1337
      %v1340 = vextract.low.u32 %v1339
      %v1341 = vextract.high.u32 %v1339
      %v1342 = vmul.u32.u64.compose %v1338, %v1333
      %v1343 = vextract.low.u32 %v1342
      %v1344 = vextract.high.u32 %v1342
      %v1345 = vmul.u32 %v1338, %v1329
      %v1346 = vadd.s32 %v1341, %v1343
      %vm1347 = vc.u32 %v1341, %v1343
      %v1348 = vadd.s32 %v1344, 1
      %v1349 = vsel %vm1347, %v1348, %v1344
      %v1350 = vadd.s32 %v1345, %v1349
      %v1351 = vadd.s32 %v1350, 536870912
      %v1352 = vshrl.u32 %v1351, 30
      %v1353 = vshll.u32 %v1352, 30
      %v1354 = vsub.s32 %v1350, %v1353
      %vm1355 = vcmp.lt.s32.totalorder %v1354, 0
      %v1356 = vsub.s32 0, %v1354
      %v1357 = vsel %vm1355, %v1356, %v1354
      %v1358 = vclz %v1357
      %v1359 = vsub.s32 %v1358, 2
      %vm1360 = vcmp.gt.s32.totalorder 0, %v1359
      %v1361 = vsel %vm1360, 0, %v1359
      %v1362 = vsub.s32 32, %v1361
      %v1363 = vshll.u32 %v1354, %v1361
      %v1364 = vshrl.u32 %v1346, %v1362
      %v1365 = vor.u32 %v1363, %v1364
      %v1366 = vsub.s32 4294967266, %v1361
      %v1367 = vadd.s32 %v1366, 127
      %v1368 = vshll.u32 %v1367, 23
      %v1369 = vor.u32 4788187, %v1368
      %v1370 = vand.u32 2147483647, %v1369
      %v1372 = vcvt.s32.f32 %v1365
      %v1373 = vmul.f32 %v1372, %v1370
      %v1374 = vxor.u32 %v1373, 2147483648
      %v1375 = vsel %vm1292, %v1374, %v1373
      %v1376 = vsub.s32 4, %v1352
      %v1377 = vsel %vm1292, %v1376, %v1352
      %v1378 = vsel %vm1291, %v639, %v1375
      %v1379 = vsel %vm1291, 0, %v1377
      %v1380 = vcosq.f32.pop %v1378
      %v1381 = vsinq.f32.pop %v1378
      %vm1382 = vweird.f32 %v639
      %v1383 = vadd.s32 %v1379, 3
      %v1384 = vand.u32 %v1383, 3
      %vm1385 = vcmp.lt.s32.totalorder %v1384, 2
      %vm1386 = vcmp.eq.s32.totalorder %v1384, 0
      %v1387 = vxor.u32 %v1381, 2147483648
      %v1388 = vsel %vm1386, %v1380, %v1387
      %vm1389 = vcmp.eq.s32.totalorder %v1384, 2
      %v1390 = vxor.u32 %v1380, 2147483648
      %v1391 = vsel %vm1389, %v1390, %v1381
      %v1392 = vsel %vm1385, %v1388, %v1391
      %v1393 = vsel %vm1382, nan, %v1392
      %v1394 = vand.u32 2147483647, %v640
      %vm1395 = vcmp.le.f32.partialorder %v1394, 0.7853982
      %vm1396 = vcmp.lt.s32.totalorder %v640, 0
      %v1397 = vand.u32 %v640, 2139095040
      %v1398 = vshrl.u32 %v1397, 23
      %v1399 = vsub.s32 %v1398, 127
      %v1400 = vand.u32 2147483647, %v640
      %v1401 = vand.u32 %v1400, 8388607
      %v1402 = vor.u32 %v1401, 8388608
      %v1403 = vsub.s32 0, %v1402
      %v1404 = vadd.s32 %v1399, 1
      %vm1405 = vcmp.gt.s32.totalorder %v1404, 0
      %v1406 = vsel %vm1405, %v1404, 0
      %v1407 = vshrl.u32 %v1406, 5
      %v1408 = vand.u32 %v1406, 31
      %v1409 = vsub.s32 32, %v1408
      %v1410 = vshrl.u32 683565275, %v1409
      %v1411 = vshll.u32 683565275, %v1408
      %v1412 = vshrl.u32 2475754826, %v1409
      %v1413 = vor.u32 %v1411, %v1412
      %v1414 = vshll.u32 2475754826, %v1408
      %v1415 = vshrl.u32 2131351028, %v1409
      %v1416 = vor.u32 %v1414, %v1415
      %v1417 = vshll.u32 2131351028, %v1408
      %v1418 = vshrl.u32 2102212464, %v1409
      %v1419 = vor.u32 %v1417, %v1418
      %v1420 = vshll.u32 2102212464, %v1408
      %v1421 = vshrl.u32 920167782, %v1409
      %v1422 = vor.u32 %v1420, %v1421
      %v1423 = vshll.u32 920167782, %v1408
      %v1424 = vshrl.u32 1326507024, %v1409
      %v1425 = vor.u32 %v1423, %v1424
      %vm1426 = vcmp.lt.s32.totalorder %v1407, 1
      %vm1427 = vcmp.lt.s32.totalorder %v1407, 2
      %vm1428 = vcmp.lt.s32.totalorder %v1407, 3
      %vm1429 = vcmp.lt.s32.totalorder %v1407, 4
      %v1430 = vsel %vm1426, %v1410, %v1413
      %v1431 = vsel %vm1429, %v1419, 2102212464
      %v1432 = vsel %vm1428, %v1416, %v1431
      %v1433 = vsel %vm1427, %v1430, %v1432
      %v1434 = vsel %vm1426, %v1413, %v1416
      %v1435 = vsel %vm1429, %v1422, 920167782
      %v1436 = vsel %vm1428, %v1419, %v1435
      %v1437 = vsel %vm1427, %v1434, %v1436
      %v1438 = vsel %vm1426, %v1416, %v1419
      %v1439 = vsel %vm1429, %v1425, 1326507024
      %v1440 = vsel %vm1428, %v1422, %v1439
      %v1441 = vsel %vm1427, %v1438, %v1440
      %v1442 = vshll.u32 %v1402, 8
      %v1443 = vmul.u32.u64.compose %v1442, %v1441
      %v1444 = vextract.low.u32 %v1443
      %v1445 = vextract.high.u32 %v1443
      %v1446 = vmul.u32.u64.compose %v1442, %v1437
      %v1447 = vextract.low.u32 %v1446
      %v1448 = vextract.high.u32 %v1446
      %v1449 = vmul.u32 %v1442, %v1433
      %v1450 = vadd.s32 %v1445, %v1447
      %vm1451 = vc.u32 %v1445, %v1447
      %v1452 = vadd.s32 %v1448, 1
      %v1453 = vsel %vm1451, %v1452, %v1448
      %v1454 = vadd.s32 %v1449, %v1453
      %v1455 = vadd.s32 %v1454, 536870912
      %v1456 = vshrl.u32 %v1455, 30
      %v1457 = vshll.u32 %v1456, 30
      %v1458 = vsub.s32 %v1454, %v1457
      %vm1459 = vcmp.lt.s32.totalorder %v1458, 0
      %v1460 = vsub.s32 0, %v1458
      %v1461 = vsel %vm1459, %v1460, %v1458
      %v1462 = vclz %v1461
      %v1463 = vsub.s32 %v1462, 2
      %vm1464 = vcmp.gt.s32.totalorder 0, %v1463
      %v1465 = vsel %vm1464, 0, %v1463
      %v1466 = vsub.s32 32, %v1465
      %v1467 = vshll.u32 %v1458, %v1465
      %v1468 = vshrl.u32 %v1450, %v1466
      %v1469 = vor.u32 %v1467, %v1468
      %v1470 = vsub.s32 4294967266, %v1465
      %v1471 = vadd.s32 %v1470, 127
      %v1472 = vshll.u32 %v1471, 23
      %v1473 = vor.u32 4788187, %v1472
      %v1474 = vand.u32 2147483647, %v1473
      %v1476 = vcvt.s32.f32 %v1469
      %v1477 = vmul.f32 %v1476, %v1474
      %v1478 = vxor.u32 %v1477, 2147483648
      %v1479 = vsel %vm1396, %v1478, %v1477
      %v1480 = vsub.s32 4, %v1456
      %v1481 = vsel %vm1396, %v1480, %v1456
      %v1482 = vsel %vm1395, %v640, %v1479
      %v1483 = vsel %vm1395, 0, %v1481
      %v1484 = vcosq.f32.pop %v1482
      %v1485 = vsinq.f32.pop %v1482
      %vm1486 = vweird.f32 %v640
      %v1487 = vadd.s32 %v1483, 3
      %v1488 = vand.u32 %v1487, 3
      %vm1489 = vcmp.lt.s32.totalorder %v1488, 2
      %vm1490 = vcmp.eq.s32.totalorder %v1488, 0
      %v1491 = vxor.u32 %v1485, 2147483648
      %v1492 = vsel %vm1490, %v1484, %v1491
      %vm1493 = vcmp.eq.s32.totalorder %v1488, 2
      %v1494 = vxor.u32 %v1484, 2147483648
      %v1495 = vsel %vm1493, %v1494, %v1485
      %v1496 = vsel %vm1489, %v1492, %v1495
      %v1497 = vsel %vm1486, nan, %v1496
      %v1498 = vand.u32 2147483647, %v641
      %vm1499 = vcmp.le.f32.partialorder %v1498, 0.7853982
      %vm1500 = vcmp.lt.s32.totalorder %v641, 0
      %v1501 = vand.u32 %v641, 2139095040
      %v1502 = vshrl.u32 %v1501, 23
      %v1503 = vsub.s32 %v1502, 127
      %v1504 = vand.u32 2147483647, %v641
      %v1505 = vand.u32 %v1504, 8388607
      %v1506 = vor.u32 %v1505, 8388608
      %v1507 = vsub.s32 0, %v1506
      %v1508 = vadd.s32 %v1503, 1
      %vm1509 = vcmp.gt.s32.totalorder %v1508, 0
      %v1510 = vsel %vm1509, %v1508, 0
      %v1511 = vshrl.u32 %v1510, 5
      %v1512 = vand.u32 %v1510, 31
      %v1513 = vsub.s32 32, %v1512
      %v1514 = vshrl.u32 683565275, %v1513
      %v1515 = vshll.u32 683565275, %v1512
      %v1516 = vshrl.u32 2475754826, %v1513
      %v1517 = vor.u32 %v1515, %v1516
      %v1518 = vshll.u32 2475754826, %v1512
      %v1519 = vshrl.u32 2131351028, %v1513
      %v1520 = vor.u32 %v1518, %v1519
      %v1521 = vshll.u32 2131351028, %v1512
      %v1522 = vshrl.u32 2102212464, %v1513
      %v1523 = vor.u32 %v1521, %v1522
      %v1524 = vshll.u32 2102212464, %v1512
      %v1525 = vshrl.u32 920167782, %v1513
      %v1526 = vor.u32 %v1524, %v1525
      %v1527 = vshll.u32 920167782, %v1512
      %v1528 = vshrl.u32 1326507024, %v1513
      %v1529 = vor.u32 %v1527, %v1528
      %vm1530 = vcmp.lt.s32.totalorder %v1511, 1
      %vm1531 = vcmp.lt.s32.totalorder %v1511, 2
      %vm1532 = vcmp.lt.s32.totalorder %v1511, 3
      %vm1533 = vcmp.lt.s32.totalorder %v1511, 4
      %v1534 = vsel %vm1530, %v1514, %v1517
      %v1535 = vsel %vm1533, %v1523, 2102212464
      %v1536 = vsel %vm1532, %v1520, %v1535
      %v1537 = vsel %vm1531, %v1534, %v1536
      %v1538 = vsel %vm1530, %v1517, %v1520
      %v1539 = vsel %vm1533, %v1526, 920167782
      %v1540 = vsel %vm1532, %v1523, %v1539
      %v1541 = vsel %vm1531, %v1538, %v1540
      %v1542 = vsel %vm1530, %v1520, %v1523
      %v1543 = vsel %vm1533, %v1529, 1326507024
      %v1544 = vsel %vm1532, %v1526, %v1543
      %v1545 = vsel %vm1531, %v1542, %v1544
      %v1546 = vshll.u32 %v1506, 8
      %v1547 = vmul.u32.u64.compose %v1546, %v1545
      %v1548 = vextract.low.u32 %v1547
      %v1549 = vextract.high.u32 %v1547
      %v1550 = vmul.u32.u64.compose %v1546, %v1541
      %v1551 = vextract.low.u32 %v1550
      %v1552 = vextract.high.u32 %v1550
      %v1553 = vmul.u32 %v1546, %v1537
      %v1554 = vadd.s32 %v1549, %v1551
      %vm1555 = vc.u32 %v1549, %v1551
      %v1556 = vadd.s32 %v1552, 1
      %v1557 = vsel %vm1555, %v1556, %v1552
      %v1558 = vadd.s32 %v1553, %v1557
      %v1559 = vadd.s32 %v1558, 536870912
      %v1560 = vshrl.u32 %v1559, 30
      %v1561 = vshll.u32 %v1560, 30
      %v1562 = vsub.s32 %v1558, %v1561
      %vm1563 = vcmp.lt.s32.totalorder %v1562, 0
      %v1564 = vsub.s32 0, %v1562
      %v1565 = vsel %vm1563, %v1564, %v1562
      %v1566 = vclz %v1565
      %v1567 = vsub.s32 %v1566, 2
      %vm1568 = vcmp.gt.s32.totalorder 0, %v1567
      %v1569 = vsel %vm1568, 0, %v1567
      %v1570 = vsub.s32 32, %v1569
      %v1571 = vshll.u32 %v1562, %v1569
      %v1572 = vshrl.u32 %v1554, %v1570
      %v1573 = vor.u32 %v1571, %v1572
      %v1574 = vsub.s32 4294967266, %v1569
      %v1575 = vadd.s32 %v1574, 127
      %v1576 = vshll.u32 %v1575, 23
      %v1577 = vor.u32 4788187, %v1576
      %v1578 = vand.u32 2147483647, %v1577
      %v1580 = vcvt.s32.f32 %v1573
      %v1581 = vmul.f32 %v1580, %v1578
      %v1582 = vxor.u32 %v1581, 2147483648
      %v1583 = vsel %vm1500, %v1582, %v1581
      %v1584 = vsub.s32 4, %v1560
      %v1585 = vsel %vm1500, %v1584, %v1560
      %v1586 = vsel %vm1499, %v641, %v1583
      %v1587 = vsel %vm1499, 0, %v1585
      %v1588 = vcosq.f32.pop %v1586
      %v1589 = vsinq.f32.pop %v1586
      %vm1590 = vweird.f32 %v641
      %v1591 = vadd.s32 %v1587, 3
      %v1592 = vand.u32 %v1591, 3
      %vm1593 = vcmp.lt.s32.totalorder %v1592, 2
      %vm1594 = vcmp.eq.s32.totalorder %v1592, 0
      %v1595 = vxor.u32 %v1589, 2147483648
      %v1596 = vsel %vm1594, %v1588, %v1595
      %vm1597 = vcmp.eq.s32.totalorder %v1592, 2
      %v1598 = vxor.u32 %v1588, 2147483648
      %v1599 = vsel %vm1597, %v1598, %v1589
      %v1600 = vsel %vm1593, %v1596, %v1599
      %v1601 = vsel %vm1590, nan, %v1600
      %v1602 = vand.u32 2147483647, %v642
      %vm1603 = vcmp.le.f32.partialorder %v1602, 0.7853982
      %vm1604 = vcmp.lt.s32.totalorder %v642, 0
      %v1605 = vand.u32 %v642, 2139095040
      %v1606 = vshrl.u32 %v1605, 23
      %v1607 = vsub.s32 %v1606, 127
      %v1608 = vand.u32 2147483647, %v642
      %v1609 = vand.u32 %v1608, 8388607
      %v1610 = vor.u32 %v1609, 8388608
      %v1611 = vsub.s32 0, %v1610
      %v1612 = vadd.s32 %v1607, 1
      %vm1613 = vcmp.gt.s32.totalorder %v1612, 0
      %v1614 = vsel %vm1613, %v1612, 0
      %v1615 = vshrl.u32 %v1614, 5
      %v1616 = vand.u32 %v1614, 31
      %v1617 = vsub.s32 32, %v1616
      %v1618 = vshrl.u32 683565275, %v1617
      %v1619 = vshll.u32 683565275, %v1616
      %v1620 = vshrl.u32 2475754826, %v1617
      %v1621 = vor.u32 %v1619, %v1620
      %v1622 = vshll.u32 2475754826, %v1616
      %v1623 = vshrl.u32 2131351028, %v1617
      %v1624 = vor.u32 %v1622, %v1623
      %v1625 = vshll.u32 2131351028, %v1616
      %v1626 = vshrl.u32 2102212464, %v1617
      %v1627 = vor.u32 %v1625, %v1626
      %v1628 = vshll.u32 2102212464, %v1616
      %v1629 = vshrl.u32 920167782, %v1617
      %v1630 = vor.u32 %v1628, %v1629
      %v1631 = vshll.u32 920167782, %v1616
      %v1632 = vshrl.u32 1326507024, %v1617
      %v1633 = vor.u32 %v1631, %v1632
      %vm1634 = vcmp.lt.s32.totalorder %v1615, 1
      %vm1635 = vcmp.lt.s32.totalorder %v1615, 2
      %vm1636 = vcmp.lt.s32.totalorder %v1615, 3
      %vm1637 = vcmp.lt.s32.totalorder %v1615, 4
      %v1638 = vsel %vm1634, %v1618, %v1621
      %v1639 = vsel %vm1637, %v1627, 2102212464
      %v1640 = vsel %vm1636, %v1624, %v1639
      %v1641 = vsel %vm1635, %v1638, %v1640
      %v1642 = vsel %vm1634, %v1621, %v1624
      %v1643 = vsel %vm1637, %v1630, 920167782
      %v1644 = vsel %vm1636, %v1627, %v1643
      %v1645 = vsel %vm1635, %v1642, %v1644
      %v1646 = vsel %vm1634, %v1624, %v1627
      %v1647 = vsel %vm1637, %v1633, 1326507024
      %v1648 = vsel %vm1636, %v1630, %v1647
      %v1649 = vsel %vm1635, %v1646, %v1648
      %v1650 = vshll.u32 %v1610, 8
      %v1651 = vmul.u32.u64.compose %v1650, %v1649
      %v1652 = vextract.low.u32 %v1651
      %v1653 = vextract.high.u32 %v1651
      %v1654 = vmul.u32.u64.compose %v1650, %v1645
      %v1655 = vextract.low.u32 %v1654
      %v1656 = vextract.high.u32 %v1654
      %v1657 = vmul.u32 %v1650, %v1641
      %v1658 = vadd.s32 %v1653, %v1655
      %vm1659 = vc.u32 %v1653, %v1655
      %v1660 = vadd.s32 %v1656, 1
      %v1661 = vsel %vm1659, %v1660, %v1656
      %v1662 = vadd.s32 %v1657, %v1661
      %v1663 = vadd.s32 %v1662, 536870912
      %v1664 = vshrl.u32 %v1663, 30
      %v1665 = vshll.u32 %v1664, 30
      %v1666 = vsub.s32 %v1662, %v1665
      %vm1667 = vcmp.lt.s32.totalorder %v1666, 0
      %v1668 = vsub.s32 0, %v1666
      %v1669 = vsel %vm1667, %v1668, %v1666
      %v1670 = vclz %v1669
      %v1671 = vsub.s32 %v1670, 2
      %vm1672 = vcmp.gt.s32.totalorder 0, %v1671
      %v1673 = vsel %vm1672, 0, %v1671
      %v1674 = vsub.s32 32, %v1673
      %v1675 = vshll.u32 %v1666, %v1673
      %v1676 = vshrl.u32 %v1658, %v1674
      %v1677 = vor.u32 %v1675, %v1676
      %v1678 = vsub.s32 4294967266, %v1673
      %v1679 = vadd.s32 %v1678, 127
      %v1680 = vshll.u32 %v1679, 23
      %v1681 = vor.u32 4788187, %v1680
      %v1682 = vand.u32 2147483647, %v1681
      %v1684 = vcvt.s32.f32 %v1677
      %v1685 = vmul.f32 %v1684, %v1682
      %v1686 = vxor.u32 %v1685, 2147483648
      %v1687 = vsel %vm1604, %v1686, %v1685
      %v1688 = vsub.s32 4, %v1664
      %v1689 = vsel %vm1604, %v1688, %v1664
      %v1690 = vsel %vm1603, %v642, %v1687
      %v1691 = vsel %vm1603, 0, %v1689
      %v1692 = vcosq.f32.pop %v1690
      %v1693 = vsinq.f32.pop %v1690
      %vm1694 = vweird.f32 %v642
      %v1695 = vadd.s32 %v1691, 3
      %v1696 = vand.u32 %v1695, 3
      %vm1697 = vcmp.lt.s32.totalorder %v1696, 2
      %vm1698 = vcmp.eq.s32.totalorder %v1696, 0
      %v1699 = vxor.u32 %v1693, 2147483648
      %v1700 = vsel %vm1698, %v1692, %v1699
      %vm1701 = vcmp.eq.s32.totalorder %v1696, 2
      %v1702 = vxor.u32 %v1692, 2147483648
      %v1703 = vsel %vm1701, %v1702, %v1693
      %v1704 = vsel %vm1697, %v1700, %v1703
      %v1705 = vsel %vm1694, nan, %v1704
      %v1706 = vand.u32 2147483647, %v643
      %vm1707 = vcmp.le.f32.partialorder %v1706, 0.7853982
      %vm1708 = vcmp.lt.s32.totalorder %v643, 0
      %v1709 = vand.u32 %v643, 2139095040
      %v1710 = vshrl.u32 %v1709, 23
      %v1711 = vsub.s32 %v1710, 127
      %v1712 = vand.u32 2147483647, %v643
      %v1713 = vand.u32 %v1712, 8388607
      %v1714 = vor.u32 %v1713, 8388608
      %v1715 = vsub.s32 0, %v1714
      %v1716 = vadd.s32 %v1711, 1
      %vm1717 = vcmp.gt.s32.totalorder %v1716, 0
      %v1718 = vsel %vm1717, %v1716, 0
      %v1719 = vshrl.u32 %v1718, 5
      %v1720 = vand.u32 %v1718, 31
      %v1721 = vsub.s32 32, %v1720
      %v1722 = vshrl.u32 683565275, %v1721
      %v1723 = vshll.u32 683565275, %v1720
      %v1724 = vshrl.u32 2475754826, %v1721
      %v1725 = vor.u32 %v1723, %v1724
      %v1726 = vshll.u32 2475754826, %v1720
      %v1727 = vshrl.u32 2131351028, %v1721
      %v1728 = vor.u32 %v1726, %v1727
      %v1729 = vshll.u32 2131351028, %v1720
      %v1730 = vshrl.u32 2102212464, %v1721
      %v1731 = vor.u32 %v1729, %v1730
      %v1732 = vshll.u32 2102212464, %v1720
      %v1733 = vshrl.u32 920167782, %v1721
      %v1734 = vor.u32 %v1732, %v1733
      %v1735 = vshll.u32 920167782, %v1720
      %v1736 = vshrl.u32 1326507024, %v1721
      %v1737 = vor.u32 %v1735, %v1736
      %vm1738 = vcmp.lt.s32.totalorder %v1719, 1
      %vm1739 = vcmp.lt.s32.totalorder %v1719, 2
      %vm1740 = vcmp.lt.s32.totalorder %v1719, 3
      %vm1741 = vcmp.lt.s32.totalorder %v1719, 4
      %v1742 = vsel %vm1738, %v1722, %v1725
      %v1743 = vsel %vm1741, %v1731, 2102212464
      %v1744 = vsel %vm1740, %v1728, %v1743
      %v1745 = vsel %vm1739, %v1742, %v1744
      %v1746 = vsel %vm1738, %v1725, %v1728
      %v1747 = vsel %vm1741, %v1734, 920167782
      %v1748 = vsel %vm1740, %v1731, %v1747
      %v1749 = vsel %vm1739, %v1746, %v1748
      %v1750 = vsel %vm1738, %v1728, %v1731
      %v1751 = vsel %vm1741, %v1737, 1326507024
      %v1752 = vsel %vm1740, %v1734, %v1751
      %v1753 = vsel %vm1739, %v1750, %v1752
      %v1754 = vshll.u32 %v1714, 8
      %v1755 = vmul.u32.u64.compose %v1754, %v1753
      %v1756 = vextract.low.u32 %v1755
      %v1757 = vextract.high.u32 %v1755
      %v1758 = vmul.u32.u64.compose %v1754, %v1749
      %v1759 = vextract.low.u32 %v1758
      %v1760 = vextract.high.u32 %v1758
      %v1761 = vmul.u32 %v1754, %v1745
      %v1762 = vadd.s32 %v1757, %v1759
      %vm1763 = vc.u32 %v1757, %v1759
      %v1764 = vadd.s32 %v1760, 1
      %v1765 = vsel %vm1763, %v1764, %v1760
      %v1766 = vadd.s32 %v1761, %v1765
      %v1767 = vadd.s32 %v1766, 536870912
      %v1768 = vshrl.u32 %v1767, 30
      %v1769 = vshll.u32 %v1768, 30
      %v1770 = vsub.s32 %v1766, %v1769
      %vm1771 = vcmp.lt.s32.totalorder %v1770, 0
      %v1772 = vsub.s32 0, %v1770
      %v1773 = vsel %vm1771, %v1772, %v1770
      %v1774 = vclz %v1773
      %v1775 = vsub.s32 %v1774, 2
      %vm1776 = vcmp.gt.s32.totalorder 0, %v1775
      %v1777 = vsel %vm1776, 0, %v1775
      %v1778 = vsub.s32 32, %v1777
      %v1779 = vshll.u32 %v1770, %v1777
      %v1780 = vshrl.u32 %v1762, %v1778
      %v1781 = vor.u32 %v1779, %v1780
      %v1782 = vsub.s32 4294967266, %v1777
      %v1783 = vadd.s32 %v1782, 127
      %v1784 = vshll.u32 %v1783, 23
      %v1785 = vor.u32 4788187, %v1784
      %v1786 = vand.u32 2147483647, %v1785
      %v1788 = vcvt.s32.f32 %v1781
      %v1789 = vmul.f32 %v1788, %v1786
      %v1790 = vxor.u32 %v1789, 2147483648
      %v1791 = vsel %vm1708, %v1790, %v1789
      %v1792 = vsub.s32 4, %v1768
      %v1793 = vsel %vm1708, %v1792, %v1768
      %v1794 = vsel %vm1707, %v643, %v1791
      %v1795 = vsel %vm1707, 0, %v1793
      %v1796 = vcosq.f32.pop %v1794
      %v1797 = vsinq.f32.pop %v1794
      %vm1798 = vweird.f32 %v643
      %v1799 = vadd.s32 %v1795, 3
      %v1800 = vand.u32 %v1799, 3
      %vm1801 = vcmp.lt.s32.totalorder %v1800, 2
      %vm1802 = vcmp.eq.s32.totalorder %v1800, 0
      %v1803 = vxor.u32 %v1797, 2147483648
      %v1804 = vsel %vm1802, %v1796, %v1803
      %vm1805 = vcmp.eq.s32.totalorder %v1800, 2
      %v1806 = vxor.u32 %v1796, 2147483648
      %v1807 = vsel %vm1805, %v1806, %v1797
      %v1808 = vsel %vm1801, %v1804, %v1807
      %v1809 = vsel %vm1798, nan, %v1808
      %v1810 = vand.u32 2147483647, %v644
      %vm1811 = vcmp.le.f32.partialorder %v1810, 0.7853982
      %vm1812 = vcmp.lt.s32.totalorder %v644, 0
      %v1813 = vand.u32 %v644, 2139095040
      %v1814 = vshrl.u32 %v1813, 23
      %v1815 = vsub.s32 %v1814, 127
      %v1816 = vand.u32 2147483647, %v644
      %v1817 = vand.u32 %v1816, 8388607
      %v1818 = vor.u32 %v1817, 8388608
      %v1819 = vsub.s32 0, %v1818
      %v1820 = vadd.s32 %v1815, 1
      %vm1821 = vcmp.gt.s32.totalorder %v1820, 0
      %v1822 = vsel %vm1821, %v1820, 0
      %v1823 = vshrl.u32 %v1822, 5
      %v1824 = vand.u32 %v1822, 31
      %v1825 = vsub.s32 32, %v1824
      %v1826 = vshrl.u32 683565275, %v1825
      %v1827 = vshll.u32 683565275, %v1824
      %v1828 = vshrl.u32 2475754826, %v1825
      %v1829 = vor.u32 %v1827, %v1828
      %v1830 = vshll.u32 2475754826, %v1824
      %v1831 = vshrl.u32 2131351028, %v1825
      %v1832 = vor.u32 %v1830, %v1831
      %v1833 = vshll.u32 2131351028, %v1824
      %v1834 = vshrl.u32 2102212464, %v1825
      %v1835 = vor.u32 %v1833, %v1834
      %v1836 = vshll.u32 2102212464, %v1824
      %v1837 = vshrl.u32 920167782, %v1825
      %v1838 = vor.u32 %v1836, %v1837
      %v1839 = vshll.u32 920167782, %v1824
      %v1840 = vshrl.u32 1326507024, %v1825
      %v1841 = vor.u32 %v1839, %v1840
      %vm1842 = vcmp.lt.s32.totalorder %v1823, 1
      %vm1843 = vcmp.lt.s32.totalorder %v1823, 2
      %vm1844 = vcmp.lt.s32.totalorder %v1823, 3
      %vm1845 = vcmp.lt.s32.totalorder %v1823, 4
      %v1846 = vsel %vm1842, %v1826, %v1829
      %v1847 = vsel %vm1845, %v1835, 2102212464
      %v1848 = vsel %vm1844, %v1832, %v1847
      %v1849 = vsel %vm1843, %v1846, %v1848
      %v1850 = vsel %vm1842, %v1829, %v1832
      %v1851 = vsel %vm1845, %v1838, 920167782
      %v1852 = vsel %vm1844, %v1835, %v1851
      %v1853 = vsel %vm1843, %v1850, %v1852
      %v1854 = vsel %vm1842, %v1832, %v1835
      %v1855 = vsel %vm1845, %v1841, 1326507024
      %v1856 = vsel %vm1844, %v1838, %v1855
      %v1857 = vsel %vm1843, %v1854, %v1856
      %v1858 = vshll.u32 %v1818, 8
      %v1859 = vmul.u32.u64.compose %v1858, %v1857
      %v1860 = vextract.low.u32 %v1859
      %v1861 = vextract.high.u32 %v1859
      %v1862 = vmul.u32.u64.compose %v1858, %v1853
      %v1863 = vextract.low.u32 %v1862
      %v1864 = vextract.high.u32 %v1862
      %v1865 = vmul.u32 %v1858, %v1849
      %v1866 = vadd.s32 %v1861, %v1863
      %vm1867 = vc.u32 %v1861, %v1863
      %v1868 = vadd.s32 %v1864, 1
      %v1869 = vsel %vm1867, %v1868, %v1864
      %v1870 = vadd.s32 %v1865, %v1869
      %v1871 = vadd.s32 %v1870, 536870912
      %v1872 = vshrl.u32 %v1871, 30
      %v1873 = vshll.u32 %v1872, 30
      %v1874 = vsub.s32 %v1870, %v1873
      %vm1875 = vcmp.lt.s32.totalorder %v1874, 0
      %v1876 = vsub.s32 0, %v1874
      %v1877 = vsel %vm1875, %v1876, %v1874
      %v1878 = vclz %v1877
      %v1879 = vsub.s32 %v1878, 2
      %vm1880 = vcmp.gt.s32.totalorder 0, %v1879
      %v1881 = vsel %vm1880, 0, %v1879
      %v1882 = vsub.s32 32, %v1881
      %v1883 = vshll.u32 %v1874, %v1881
      %v1884 = vshrl.u32 %v1866, %v1882
      %v1885 = vor.u32 %v1883, %v1884
      %v1886 = vsub.s32 4294967266, %v1881
      %v1887 = vadd.s32 %v1886, 127
      %v1888 = vshll.u32 %v1887, 23
      %v1889 = vor.u32 4788187, %v1888
      %v1890 = vand.u32 2147483647, %v1889
      %v1892 = vcvt.s32.f32 %v1885
      %v1893 = vmul.f32 %v1892, %v1890
      %v1894 = vxor.u32 %v1893, 2147483648
      %v1895 = vsel %vm1812, %v1894, %v1893
      %v1896 = vsub.s32 4, %v1872
      %v1897 = vsel %vm1812, %v1896, %v1872
      %v1898 = vsel %vm1811, %v644, %v1895
      %v1899 = vsel %vm1811, 0, %v1897
      %v1900 = vcosq.f32.pop %v1898
      %v1901 = vsinq.f32.pop %v1898
      %vm1902 = vweird.f32 %v644
      %v1903 = vadd.s32 %v1899, 3
      %v1904 = vand.u32 %v1903, 3
      %vm1905 = vcmp.lt.s32.totalorder %v1904, 2
      %vm1906 = vcmp.eq.s32.totalorder %v1904, 0
      %v1907 = vxor.u32 %v1901, 2147483648
      %v1908 = vsel %vm1906, %v1900, %v1907
      %vm1909 = vcmp.eq.s32.totalorder %v1904, 2
      %v1910 = vxor.u32 %v1900, 2147483648
      %v1911 = vsel %vm1909, %v1910, %v1901
      %v1912 = vsel %vm1905, %v1908, %v1911
      %v1913 = vsel %vm1902, nan, %v1912
      %v1914 = vand.u32 2147483647, %v645
      %vm1915 = vcmp.le.f32.partialorder %v1914, 0.7853982
      %vm1916 = vcmp.lt.s32.totalorder %v645, 0
      %v1917 = vand.u32 %v645, 2139095040
      %v1918 = vshrl.u32 %v1917, 23
      %v1919 = vsub.s32 %v1918, 127
      %v1920 = vand.u32 2147483647, %v645
      %v1921 = vand.u32 %v1920, 8388607
      %v1922 = vor.u32 %v1921, 8388608
      %v1923 = vsub.s32 0, %v1922
      %v1924 = vadd.s32 %v1919, 1
      %vm1925 = vcmp.gt.s32.totalorder %v1924, 0
      %v1926 = vsel %vm1925, %v1924, 0
      %v1927 = vshrl.u32 %v1926, 5
      %v1928 = vand.u32 %v1926, 31
      %v1929 = vsub.s32 32, %v1928
      %v1930 = vshrl.u32 683565275, %v1929
      %v1931 = vshll.u32 683565275, %v1928
      %v1932 = vshrl.u32 2475754826, %v1929
      %v1933 = vor.u32 %v1931, %v1932
      %v1934 = vshll.u32 2475754826, %v1928
      %v1935 = vshrl.u32 2131351028, %v1929
      %v1936 = vor.u32 %v1934, %v1935
      %v1937 = vshll.u32 2131351028, %v1928
      %v1938 = vshrl.u32 2102212464, %v1929
      %v1939 = vor.u32 %v1937, %v1938
      %v1940 = vshll.u32 2102212464, %v1928
      %v1941 = vshrl.u32 920167782, %v1929
      %v1942 = vor.u32 %v1940, %v1941
      %v1943 = vshll.u32 920167782, %v1928
      %v1944 = vshrl.u32 1326507024, %v1929
      %v1945 = vor.u32 %v1943, %v1944
      %vm1946 = vcmp.lt.s32.totalorder %v1927, 1
      %vm1947 = vcmp.lt.s32.totalorder %v1927, 2
      %vm1948 = vcmp.lt.s32.totalorder %v1927, 3
      %vm1949 = vcmp.lt.s32.totalorder %v1927, 4
      %v1950 = vsel %vm1946, %v1930, %v1933
      %v1951 = vsel %vm1949, %v1939, 2102212464
      %v1952 = vsel %vm1948, %v1936, %v1951
      %v1953 = vsel %vm1947, %v1950, %v1952
      %v1954 = vsel %vm1946, %v1933, %v1936
      %v1955 = vsel %vm1949, %v1942, 920167782
      %v1956 = vsel %vm1948, %v1939, %v1955
      %v1957 = vsel %vm1947, %v1954, %v1956
      %v1958 = vsel %vm1946, %v1936, %v1939
      %v1959 = vsel %vm1949, %v1945, 1326507024
      %v1960 = vsel %vm1948, %v1942, %v1959
      %v1961 = vsel %vm1947, %v1958, %v1960
      %v1962 = vshll.u32 %v1922, 8
      %v1963 = vmul.u32.u64.compose %v1962, %v1961
      %v1964 = vextract.low.u32 %v1963
      %v1965 = vextract.high.u32 %v1963
      %v1966 = vmul.u32.u64.compose %v1962, %v1957
      %v1967 = vextract.low.u32 %v1966
      %v1968 = vextract.high.u32 %v1966
      %v1969 = vmul.u32 %v1962, %v1953
      %v1970 = vadd.s32 %v1965, %v1967
      %vm1971 = vc.u32 %v1965, %v1967
      %v1972 = vadd.s32 %v1968, 1
      %v1973 = vsel %vm1971, %v1972, %v1968
      %v1974 = vadd.s32 %v1969, %v1973
      %v1975 = vadd.s32 %v1974, 536870912
      %v1976 = vshrl.u32 %v1975, 30
      %v1977 = vshll.u32 %v1976, 30
      %v1978 = vsub.s32 %v1974, %v1977
      %vm1979 = vcmp.lt.s32.totalorder %v1978, 0
      %v1980 = vsub.s32 0, %v1978
      %v1981 = vsel %vm1979, %v1980, %v1978
      %v1982 = vclz %v1981
      %v1983 = vsub.s32 %v1982, 2
      %vm1984 = vcmp.gt.s32.totalorder 0, %v1983
      %v1985 = vsel %vm1984, 0, %v1983
      %v1986 = vsub.s32 32, %v1985
      %v1987 = vshll.u32 %v1978, %v1985
      %v1988 = vshrl.u32 %v1970, %v1986
      %v1989 = vor.u32 %v1987, %v1988
      %v1990 = vsub.s32 4294967266, %v1985
      %v1991 = vadd.s32 %v1990, 127
      %v1992 = vshll.u32 %v1991, 23
      %v1993 = vor.u32 4788187, %v1992
      %v1994 = vand.u32 2147483647, %v1993
      %v1996 = vcvt.s32.f32 %v1989
      %v1997 = vmul.f32 %v1996, %v1994
      %v1998 = vxor.u32 %v1997, 2147483648
      %v1999 = vsel %vm1916, %v1998, %v1997
      %v2000 = vsub.s32 4, %v1976
      %v2001 = vsel %vm1916, %v2000, %v1976
      %v2002 = vsel %vm1915, %v645, %v1999
      %v2003 = vsel %vm1915, 0, %v2001
      %v2004 = vcosq.f32.pop %v2002
      %v2005 = vsinq.f32.pop %v2002
      %vm2006 = vweird.f32 %v645
      %v2007 = vadd.s32 %v2003, 3
      %v2008 = vand.u32 %v2007, 3
      %vm2009 = vcmp.lt.s32.totalorder %v2008, 2
      %vm2010 = vcmp.eq.s32.totalorder %v2008, 0
      %v2011 = vxor.u32 %v2005, 2147483648
      %v2012 = vsel %vm2010, %v2004, %v2011
      %vm2013 = vcmp.eq.s32.totalorder %v2008, 2
      %v2014 = vxor.u32 %v2004, 2147483648
      %v2015 = vsel %vm2013, %v2014, %v2005
      %v2016 = vsel %vm2009, %v2012, %v2015
      %v2017 = vsel %vm2006, nan, %v2016
      %v2018 = vand.u32 2147483647, %v646
      %vm2019 = vcmp.le.f32.partialorder %v2018, 0.7853982
      %vm2020 = vcmp.lt.s32.totalorder %v646, 0
      %v2021 = vand.u32 %v646, 2139095040
      %v2022 = vshrl.u32 %v2021, 23
      %v2023 = vsub.s32 %v2022, 127
      %v2024 = vand.u32 2147483647, %v646
      %v2025 = vand.u32 %v2024, 8388607
      %v2026 = vor.u32 %v2025, 8388608
      %v2027 = vsub.s32 0, %v2026
      %v2028 = vadd.s32 %v2023, 1
      %vm2029 = vcmp.gt.s32.totalorder %v2028, 0
      %v2030 = vsel %vm2029, %v2028, 0
      %v2031 = vshrl.u32 %v2030, 5
      %v2032 = vand.u32 %v2030, 31
      %v2033 = vsub.s32 32, %v2032
      %v2034 = vshrl.u32 683565275, %v2033
      %v2035 = vshll.u32 683565275, %v2032
      %v2036 = vshrl.u32 2475754826, %v2033
      %v2037 = vor.u32 %v2035, %v2036
      %v2038 = vshll.u32 2475754826, %v2032
      %v2039 = vshrl.u32 2131351028, %v2033
      %v2040 = vor.u32 %v2038, %v2039
      %v2041 = vshll.u32 2131351028, %v2032
      %v2042 = vshrl.u32 2102212464, %v2033
      %v2043 = vor.u32 %v2041, %v2042
      %v2044 = vshll.u32 2102212464, %v2032
      %v2045 = vshrl.u32 920167782, %v2033
      %v2046 = vor.u32 %v2044, %v2045
      %v2047 = vshll.u32 920167782, %v2032
      %v2048 = vshrl.u32 1326507024, %v2033
      %v2049 = vor.u32 %v2047, %v2048
      %vm2050 = vcmp.lt.s32.totalorder %v2031, 1
      %vm2051 = vcmp.lt.s32.totalorder %v2031, 2
      %vm2052 = vcmp.lt.s32.totalorder %v2031, 3
      %vm2053 = vcmp.lt.s32.totalorder %v2031, 4
      %v2054 = vsel %vm2050, %v2034, %v2037
      %v2055 = vsel %vm2053, %v2043, 2102212464
      %v2056 = vsel %vm2052, %v2040, %v2055
      %v2057 = vsel %vm2051, %v2054, %v2056
      %v2058 = vsel %vm2050, %v2037, %v2040
      %v2059 = vsel %vm2053, %v2046, 920167782
      %v2060 = vsel %vm2052, %v2043, %v2059
      %v2061 = vsel %vm2051, %v2058, %v2060
      %v2062 = vsel %vm2050, %v2040, %v2043
      %v2063 = vsel %vm2053, %v2049, 1326507024
      %v2064 = vsel %vm2052, %v2046, %v2063
      %v2065 = vsel %vm2051, %v2062, %v2064
      %v2066 = vshll.u32 %v2026, 8
      %v2067 = vmul.u32.u64.compose %v2066, %v2065
      %v2068 = vextract.low.u32 %v2067
      %v2069 = vextract.high.u32 %v2067
      %v2070 = vmul.u32.u64.compose %v2066, %v2061
      %v2071 = vextract.low.u32 %v2070
      %v2072 = vextract.high.u32 %v2070
      %v2073 = vmul.u32 %v2066, %v2057
      %v2074 = vadd.s32 %v2069, %v2071
      %vm2075 = vc.u32 %v2069, %v2071
      %v2076 = vadd.s32 %v2072, 1
      %v2077 = vsel %vm2075, %v2076, %v2072
      %v2078 = vadd.s32 %v2073, %v2077
      %v2079 = vadd.s32 %v2078, 536870912
      %v2080 = vshrl.u32 %v2079, 30
      %v2081 = vshll.u32 %v2080, 30
      %v2082 = vsub.s32 %v2078, %v2081
      %vm2083 = vcmp.lt.s32.totalorder %v2082, 0
      %v2084 = vsub.s32 0, %v2082
      %v2085 = vsel %vm2083, %v2084, %v2082
      %v2086 = vclz %v2085
      %v2087 = vsub.s32 %v2086, 2
      %vm2088 = vcmp.gt.s32.totalorder 0, %v2087
      %v2089 = vsel %vm2088, 0, %v2087
      %v2090 = vsub.s32 32, %v2089
      %v2091 = vshll.u32 %v2082, %v2089
      %v2092 = vshrl.u32 %v2074, %v2090
      %v2093 = vor.u32 %v2091, %v2092
      %v2094 = vsub.s32 4294967266, %v2089
      %v2095 = vadd.s32 %v2094, 127
      %v2096 = vshll.u32 %v2095, 23
      %v2097 = vor.u32 4788187, %v2096
      %v2098 = vand.u32 2147483647, %v2097
      %v2100 = vcvt.s32.f32 %v2093
      %v2101 = vmul.f32 %v2100, %v2098
      %v2102 = vxor.u32 %v2101, 2147483648
      %v2103 = vsel %vm2020, %v2102, %v2101
      %v2104 = vsub.s32 4, %v2080
      %v2105 = vsel %vm2020, %v2104, %v2080
      %v2106 = vsel %vm2019, %v646, %v2103
      %v2107 = vsel %vm2019, 0, %v2105
      %v2108 = vcosq.f32.pop %v2106
      %v2109 = vsinq.f32.pop %v2106
      %vm2110 = vweird.f32 %v646
      %v2111 = vadd.s32 %v2107, 3
      %v2112 = vand.u32 %v2111, 3
      %vm2113 = vcmp.lt.s32.totalorder %v2112, 2
      %vm2114 = vcmp.eq.s32.totalorder %v2112, 0
      %v2115 = vxor.u32 %v2109, 2147483648
      %v2116 = vsel %vm2114, %v2108, %v2115
      %vm2117 = vcmp.eq.s32.totalorder %v2112, 2
      %v2118 = vxor.u32 %v2108, 2147483648
      %v2119 = vsel %vm2117, %v2118, %v2109
      %v2120 = vsel %vm2113, %v2116, %v2119
      %v2121 = vsel %vm2110, nan, %v2120
      %v2122 = vand.u32 2147483647, %v647
      %vm2123 = vcmp.le.f32.partialorder %v2122, 0.7853982
      %vm2124 = vcmp.lt.s32.totalorder %v647, 0
      %v2125 = vand.u32 %v647, 2139095040
      %v2126 = vshrl.u32 %v2125, 23
      %v2127 = vsub.s32 %v2126, 127
      %v2128 = vand.u32 2147483647, %v647
      %v2129 = vand.u32 %v2128, 8388607
      %v2130 = vor.u32 %v2129, 8388608
      %v2131 = vsub.s32 0, %v2130
      %v2132 = vadd.s32 %v2127, 1
      %vm2133 = vcmp.gt.s32.totalorder %v2132, 0
      %v2134 = vsel %vm2133, %v2132, 0
      %v2135 = vshrl.u32 %v2134, 5
      %v2136 = vand.u32 %v2134, 31
      %v2137 = vsub.s32 32, %v2136
      %v2138 = vshrl.u32 683565275, %v2137
      %v2139 = vshll.u32 683565275, %v2136
      %v2140 = vshrl.u32 2475754826, %v2137
      %v2141 = vor.u32 %v2139, %v2140
      %v2142 = vshll.u32 2475754826, %v2136
      %v2143 = vshrl.u32 2131351028, %v2137
      %v2144 = vor.u32 %v2142, %v2143
      %v2145 = vshll.u32 2131351028, %v2136
      %v2146 = vshrl.u32 2102212464, %v2137
      %v2147 = vor.u32 %v2145, %v2146
      %v2148 = vshll.u32 2102212464, %v2136
      %v2149 = vshrl.u32 920167782, %v2137
      %v2150 = vor.u32 %v2148, %v2149
      %v2151 = vshll.u32 920167782, %v2136
      %v2152 = vshrl.u32 1326507024, %v2137
      %v2153 = vor.u32 %v2151, %v2152
      %vm2154 = vcmp.lt.s32.totalorder %v2135, 1
      %vm2155 = vcmp.lt.s32.totalorder %v2135, 2
      %vm2156 = vcmp.lt.s32.totalorder %v2135, 3
      %vm2157 = vcmp.lt.s32.totalorder %v2135, 4
      %v2158 = vsel %vm2154, %v2138, %v2141
      %v2159 = vsel %vm2157, %v2147, 2102212464
      %v2160 = vsel %vm2156, %v2144, %v2159
      %v2161 = vsel %vm2155, %v2158, %v2160
      %v2162 = vsel %vm2154, %v2141, %v2144
      %v2163 = vsel %vm2157, %v2150, 920167782
      %v2164 = vsel %vm2156, %v2147, %v2163
      %v2165 = vsel %vm2155, %v2162, %v2164
      %v2166 = vsel %vm2154, %v2144, %v2147
      %v2167 = vsel %vm2157, %v2153, 1326507024
      %v2168 = vsel %vm2156, %v2150, %v2167
      %v2169 = vsel %vm2155, %v2166, %v2168
      %v2170 = vshll.u32 %v2130, 8
      %v2171 = vmul.u32.u64.compose %v2170, %v2169
      %v2172 = vextract.low.u32 %v2171
      %v2173 = vextract.high.u32 %v2171
      %v2174 = vmul.u32.u64.compose %v2170, %v2165
      %v2175 = vextract.low.u32 %v2174
      %v2176 = vextract.high.u32 %v2174
      %v2177 = vmul.u32 %v2170, %v2161
      %v2178 = vadd.s32 %v2173, %v2175
      %vm2179 = vc.u32 %v2173, %v2175
      %v2180 = vadd.s32 %v2176, 1
      %v2181 = vsel %vm2179, %v2180, %v2176
      %v2182 = vadd.s32 %v2177, %v2181
      %v2183 = vadd.s32 %v2182, 536870912
      %v2184 = vshrl.u32 %v2183, 30
      %v2185 = vshll.u32 %v2184, 30
      %v2186 = vsub.s32 %v2182, %v2185
      %vm2187 = vcmp.lt.s32.totalorder %v2186, 0
      %v2188 = vsub.s32 0, %v2186
      %v2189 = vsel %vm2187, %v2188, %v2186
      %v2190 = vclz %v2189
      %v2191 = vsub.s32 %v2190, 2
      %vm2192 = vcmp.gt.s32.totalorder 0, %v2191
      %v2193 = vsel %vm2192, 0, %v2191
      %v2194 = vsub.s32 32, %v2193
      %v2195 = vshll.u32 %v2186, %v2193
      %v2196 = vshrl.u32 %v2178, %v2194
      %v2197 = vor.u32 %v2195, %v2196
      %v2198 = vsub.s32 4294967266, %v2193
      %v2199 = vadd.s32 %v2198, 127
      %v2200 = vshll.u32 %v2199, 23
      %v2201 = vor.u32 4788187, %v2200
      %v2202 = vand.u32 2147483647, %v2201
      %v2204 = vcvt.s32.f32 %v2197
      %v2205 = vmul.f32 %v2204, %v2202
      %v2206 = vxor.u32 %v2205, 2147483648
      %v2207 = vsel %vm2124, %v2206, %v2205
      %v2208 = vsub.s32 4, %v2184
      %v2209 = vsel %vm2124, %v2208, %v2184
      %v2210 = vsel %vm2123, %v647, %v2207
      %v2211 = vsel %vm2123, 0, %v2209
      %v2212 = vcosq.f32.pop %v2210
      %v2213 = vsinq.f32.pop %v2210
      %vm2214 = vweird.f32 %v647
      %v2215 = vadd.s32 %v2211, 3
      %v2216 = vand.u32 %v2215, 3
      %vm2217 = vcmp.lt.s32.totalorder %v2216, 2
      %vm2218 = vcmp.eq.s32.totalorder %v2216, 0
      %v2219 = vxor.u32 %v2213, 2147483648
      %v2220 = vsel %vm2218, %v2212, %v2219
      %vm2221 = vcmp.eq.s32.totalorder %v2216, 2
      %v2222 = vxor.u32 %v2212, 2147483648
      %v2223 = vsel %vm2221, %v2222, %v2213
      %v2224 = vsel %vm2217, %v2220, %v2223
      %v2225 = vsel %vm2214, nan, %v2224
      %v2226 = vand.u32 2147483647, %v648
      %vm2227 = vcmp.le.f32.partialorder %v2226, 0.7853982
      %vm2228 = vcmp.lt.s32.totalorder %v648, 0
      %v2229 = vand.u32 %v648, 2139095040
      %v2230 = vshrl.u32 %v2229, 23
      %v2231 = vsub.s32 %v2230, 127
      %v2232 = vand.u32 2147483647, %v648
      %v2233 = vand.u32 %v2232, 8388607
      %v2234 = vor.u32 %v2233, 8388608
      %v2235 = vsub.s32 0, %v2234
      %v2236 = vadd.s32 %v2231, 1
      %vm2237 = vcmp.gt.s32.totalorder %v2236, 0
      %v2238 = vsel %vm2237, %v2236, 0
      %v2239 = vshrl.u32 %v2238, 5
      %v2240 = vand.u32 %v2238, 31
      %v2241 = vsub.s32 32, %v2240
      %v2242 = vshrl.u32 683565275, %v2241
      %v2243 = vshll.u32 683565275, %v2240
      %v2244 = vshrl.u32 2475754826, %v2241
      %v2245 = vor.u32 %v2243, %v2244
      %v2246 = vshll.u32 2475754826, %v2240
      %v2247 = vshrl.u32 2131351028, %v2241
      %v2248 = vor.u32 %v2246, %v2247
      %v2249 = vshll.u32 2131351028, %v2240
      %v2250 = vshrl.u32 2102212464, %v2241
      %v2251 = vor.u32 %v2249, %v2250
      %v2252 = vshll.u32 2102212464, %v2240
      %v2253 = vshrl.u32 920167782, %v2241
      %v2254 = vor.u32 %v2252, %v2253
      %v2255 = vshll.u32 920167782, %v2240
      %v2256 = vshrl.u32 1326507024, %v2241
      %v2257 = vor.u32 %v2255, %v2256
      %vm2258 = vcmp.lt.s32.totalorder %v2239, 1
      %vm2259 = vcmp.lt.s32.totalorder %v2239, 2
      %vm2260 = vcmp.lt.s32.totalorder %v2239, 3
      %vm2261 = vcmp.lt.s32.totalorder %v2239, 4
      %v2262 = vsel %vm2258, %v2242, %v2245
      %v2263 = vsel %vm2261, %v2251, 2102212464
      %v2264 = vsel %vm2260, %v2248, %v2263
      %v2265 = vsel %vm2259, %v2262, %v2264
      %v2266 = vsel %vm2258, %v2245, %v2248
      %v2267 = vsel %vm2261, %v2254, 920167782
      %v2268 = vsel %vm2260, %v2251, %v2267
      %v2269 = vsel %vm2259, %v2266, %v2268
      %v2270 = vsel %vm2258, %v2248, %v2251
      %v2271 = vsel %vm2261, %v2257, 1326507024
      %v2272 = vsel %vm2260, %v2254, %v2271
      %v2273 = vsel %vm2259, %v2270, %v2272
      %v2274 = vshll.u32 %v2234, 8
      %v2275 = vmul.u32.u64.compose %v2274, %v2273
      %v2276 = vextract.low.u32 %v2275
      %v2277 = vextract.high.u32 %v2275
      %v2278 = vmul.u32.u64.compose %v2274, %v2269
      %v2279 = vextract.low.u32 %v2278
      %v2280 = vextract.high.u32 %v2278
      %v2281 = vmul.u32 %v2274, %v2265
      %v2282 = vadd.s32 %v2277, %v2279
      %vm2283 = vc.u32 %v2277, %v2279
      %v2284 = vadd.s32 %v2280, 1
      %v2285 = vsel %vm2283, %v2284, %v2280
      %v2286 = vadd.s32 %v2281, %v2285
      %v2287 = vadd.s32 %v2286, 536870912
      %v2288 = vshrl.u32 %v2287, 30
      %v2289 = vshll.u32 %v2288, 30
      %v2290 = vsub.s32 %v2286, %v2289
      %vm2291 = vcmp.lt.s32.totalorder %v2290, 0
      %v2292 = vsub.s32 0, %v2290
      %v2293 = vsel %vm2291, %v2292, %v2290
      %v2294 = vclz %v2293
      %v2295 = vsub.s32 %v2294, 2
      %vm2296 = vcmp.gt.s32.totalorder 0, %v2295
      %v2297 = vsel %vm2296, 0, %v2295
      %v2298 = vsub.s32 32, %v2297
      %v2299 = vshll.u32 %v2290, %v2297
      %v2300 = vshrl.u32 %v2282, %v2298
      %v2301 = vor.u32 %v2299, %v2300
      %v2302 = vsub.s32 4294967266, %v2297
      %v2303 = vadd.s32 %v2302, 127
      %v2304 = vshll.u32 %v2303, 23
      %v2305 = vor.u32 4788187, %v2304
      %v2306 = vand.u32 2147483647, %v2305
      %v2308 = vcvt.s32.f32 %v2301
      %v2309 = vmul.f32 %v2308, %v2306
      %v2310 = vxor.u32 %v2309, 2147483648
      %v2311 = vsel %vm2228, %v2310, %v2309
      %v2312 = vsub.s32 4, %v2288
      %v2313 = vsel %vm2228, %v2312, %v2288
      %v2314 = vsel %vm2227, %v648, %v2311
      %v2315 = vsel %vm2227, 0, %v2313
      %v2316 = vcosq.f32.pop %v2314
      %v2317 = vsinq.f32.pop %v2314
      %vm2318 = vweird.f32 %v648
      %v2319 = vadd.s32 %v2315, 3
      %v2320 = vand.u32 %v2319, 3
      %vm2321 = vcmp.lt.s32.totalorder %v2320, 2
      %vm2322 = vcmp.eq.s32.totalorder %v2320, 0
      %v2323 = vxor.u32 %v2317, 2147483648
      %v2324 = vsel %vm2322, %v2316, %v2323
      %vm2325 = vcmp.eq.s32.totalorder %v2320, 2
      %v2326 = vxor.u32 %v2316, 2147483648
      %v2327 = vsel %vm2325, %v2326, %v2317
      %v2328 = vsel %vm2321, %v2324, %v2327
      %v2329 = vsel %vm2318, nan, %v2328
      %v2330 = vsel %vm658, 1, 0
      %v2331 = vsel %vm659, 1, 0
      %v2332 = vsel %vm660, 1, 0
      %v2333 = vsel %vm661, 1, 0
      %v2334 = vsel %vm662, 1, 0
      %v2335 = vsel %vm663, 1, 0
      %v2336 = vsel %vm664, 1, 0
      %v2337 = vsel %vm665, 1, 0
      %vm2338 = vcmp.eq.s32.totalorder %v2330, 1
      %vm2339 = vcmp.eq.s32.totalorder %v2331, 1
      %vm2340 = vcmp.eq.s32.totalorder %v2332, 1
      %vm2341 = vcmp.eq.s32.totalorder %v2333, 1
      %vm2342 = vcmp.eq.s32.totalorder %v2334, 1
      %vm2343 = vcmp.eq.s32.totalorder %v2335, 1
      %vm2344 = vcmp.eq.s32.totalorder %v2336, 1
      %vm2345 = vcmp.eq.s32.totalorder %v2337, 1
      %v2346 = vsel %vm2338, %v633, %v769
      %v2347 = vsel %vm2338, %v634, %v873
      %v2348 = vsel %vm2339, %v635, %v977
      %v2349 = vsel %vm2339, %v636, %v1081
      %v2350 = vsel %vm2340, %v637, %v1185
      %v2351 = vsel %vm2340, %v638, %v1289
      %v2352 = vsel %vm2341, %v639, %v1393
      %v2353 = vsel %vm2341, %v640, %v1497
      %v2354 = vsel %vm2342, %v641, %v1601
      %v2355 = vsel %vm2342, %v642, %v1705
      %v2356 = vsel %vm2343, %v643, %v1809
      %v2357 = vsel %vm2343, %v644, %v1913
      %v2358 = vsel %vm2344, %v645, %v2017
      %v2359 = vsel %vm2344, %v646, %v2121
      %v2360 = vsel %vm2345, %v647, %v2225
      %v2361 = vsel %vm2345, %v648, %v2329
      %v2362 = vld [vmem:[%s3] sm:$0xf]
      %v2363 = vld [vmem:[%s3 + $0x4] sm:$0xf]
      %v2364 = vld [vmem:[%s3 + $0x8] sm:$0xf]
      %v2365 = vld [vmem:[%s3 + $0xc] sm:$0xf]
      %v2366 = vld [vmem:[%s3 + $0x10] sm:$0xf]
      %v2367 = vld [vmem:[%s3 + $0x14] sm:$0xf]
      %v2368 = vld [vmem:[%s3 + $0x18] sm:$0xf]
      %v2369 = vld [vmem:[%s3 + $0x1c] sm:$0xf]
      %v2370 = vld [vmem:[%s3 + $0x20] sm:$0xf]
      %v2371 = vld [vmem:[%s3 + $0x24] sm:$0xf]
      %v2372 = vld [vmem:[%s3 + $0x28] sm:$0xf]
      %v2373 = vld [vmem:[%s3 + $0x2c] sm:$0xf]
      %v2374 = vld [vmem:[%s3 + $0x30] sm:$0xf]
      %v2375 = vld [vmem:[%s3 + $0x34] sm:$0xf]
      %v2376 = vld [vmem:[%s3 + $0x38] sm:$0xf]
      %v2377 = vld [vmem:[%s3 + $0x3c] sm:$0xf]
      %v2378 = vpack.c.bf16 %v2348, %v2346
      %v2379 = vpack.c.bf16 %v2349, %v2347
      %v2380 = vpack.c.bf16 %v2352, %v2350
      %v2381 = vpack.c.bf16 %v2353, %v2351
      %v2382 = vpack.c.bf16 %v2356, %v2354
      %v2383 = vpack.c.bf16 %v2357, %v2355
      %v2384 = vpack.c.bf16 %v2360, %v2358
      %v2385 = vpack.c.bf16 %v2361, %v2359
      %v2386 = vld [vmem:[%s4] sm:$0xff]
      %v2387 = vld [vmem:[%s4 + $0x8] sm:$0xff]
      %v2388 = vld [vmem:[%s4 + $0x10] sm:$0xff]
      %v2389 = vld [vmem:[%s4 + $0x18] sm:$0xff]
      %v2390 = vld [vmem:[%s4 + $0x20] sm:$0xff]
      %v2391 = vld [vmem:[%s4 + $0x28] sm:$0xff]
      %v2392 = vld [vmem:[%s4 + $0x30] sm:$0xff]
      %v2393 = vld [vmem:[%s4 + $0x38] sm:$0xff]
      %v2394 = vld [vmem:[%s4 + $0x40] sm:$0xff]
      %v2395 = vld [vmem:[%s4 + $0x48] sm:$0xff]
      %v2396 = vld [vmem:[%s4 + $0x50] sm:$0xff]
      %v2397 = vld [vmem:[%s4 + $0x58] sm:$0xff]
      %v2398 = vld [vmem:[%s4 + $0x60] sm:$0xff]
      %v2399 = vld [vmem:[%s4 + $0x68] sm:$0xff]
      %v2400 = vld [vmem:[%s4 + $0x70] sm:$0xff]
      %v2401 = vld [vmem:[%s4 + $0x78] sm:$0xff]
      %2403 = vset.pattern.permute.xlu0 0
      %2404 = vperm.xlu0 %2403, %v2386
      %v2405 = vpop.permute.xlu0 %2404
      %2408 = vset.pattern.permute.xlu0 0
      %2409 = vperm.xlu0 %2408, %v2387
      %v2410 = vpop.permute.xlu0 %2409
      %2413 = vset.pattern.permute.xlu0 0
      %2414 = vperm.xlu0 %2413, %v2388
      %v2415 = vpop.permute.xlu0 %2414
      %2418 = vset.pattern.permute.xlu0 0
      %2419 = vperm.xlu0 %2418, %v2389
      %v2420 = vpop.permute.xlu0 %2419
      %2423 = vset.pattern.permute.xlu0 0
      %2424 = vperm.xlu0 %2423, %v2390
      %v2425 = vpop.permute.xlu0 %2424
      %2428 = vset.pattern.permute.xlu0 0
      %2429 = vperm.xlu0 %2428, %v2391
      %v2430 = vpop.permute.xlu0 %2429
      %2433 = vset.pattern.permute.xlu0 0
      %2434 = vperm.xlu0 %2433, %v2392
      %v2435 = vpop.permute.xlu0 %2434
      %2438 = vset.pattern.permute.xlu0 0
      %2439 = vperm.xlu0 %2438, %v2393
      %v2440 = vpop.permute.xlu0 %2439
      %2443 = vset.pattern.permute.xlu0 0
      %2444 = vperm.xlu0 %2443, %v2394
      %v2445 = vpop.permute.xlu0 %2444
      %2448 = vset.pattern.permute.xlu0 0
      %2449 = vperm.xlu0 %2448, %v2395
      %v2450 = vpop.permute.xlu0 %2449
      %2453 = vset.pattern.permute.xlu0 0
      %2454 = vperm.xlu0 %2453, %v2396
      %v2455 = vpop.permute.xlu0 %2454
      %2458 = vset.pattern.permute.xlu0 0
      %2459 = vperm.xlu0 %2458, %v2397
      %v2460 = vpop.permute.xlu0 %2459
      %2463 = vset.pattern.permute.xlu0 0
      %2464 = vperm.xlu0 %2463, %v2398
      %v2465 = vpop.permute.xlu0 %2464
      %2468 = vset.pattern.permute.xlu0 0
      %2469 = vperm.xlu0 %2468, %v2399
      %v2470 = vpop.permute.xlu0 %2469
      %2473 = vset.pattern.permute.xlu0 0
      %2474 = vperm.xlu0 %2473, %v2400
      %v2475 = vpop.permute.xlu0 %2474
      %2478 = vset.pattern.permute.xlu0 0
      %2479 = vperm.xlu0 %2478, %v2401
      %v2480 = vpop.permute.xlu0 %2479
      %v2498 = vunpack.c.l.b16 %v2362
      %v2499 = vunpack.c.l.b16 %v2363
      %v2500 = vunpack.c.l.b16 %v2364
      %v2501 = vunpack.c.l.b16 %v2365
      %v2502 = vunpack.c.l.b16 %v2366
      %v2503 = vunpack.c.l.b16 %v2367
      %v2504 = vunpack.c.l.b16 %v2368
      %v2505 = vunpack.c.l.b16 %v2369
      %v2506 = vunpack.c.l.b16 %v2370
      %v2507 = vunpack.c.l.b16 %v2371
      %v2508 = vunpack.c.l.b16 %v2372
      %v2509 = vunpack.c.l.b16 %v2373
      %v2510 = vunpack.c.l.b16 %v2374
      %v2511 = vunpack.c.l.b16 %v2375
      %v2512 = vunpack.c.l.b16 %v2376
      %v2513 = vunpack.c.l.b16 %v2377
      %v2514 = vpack.c.b16 %v2499, %v2498
      %v2515 = vpack.c.b16 %v2501, %v2500
      %v2516 = vpack.c.b16 %v2503, %v2502
      %v2517 = vpack.c.b16 %v2505, %v2504
      %v2518 = vpack.c.b16 %v2507, %v2506
      %v2519 = vpack.c.b16 %v2509, %v2508
      %v2520 = vpack.c.b16 %v2511, %v2510
      %v2521 = vpack.c.b16 %v2513, %v2512
      %vm2522 = vcmask 523264
      %v2524 = vsel %vm2522, %v2514, 0
      %v2527 = vsel %vm2522, %v2515, 0
      %v2530 = vsel %vm2522, %v2516, 0
      %v2533 = vsel %vm2522, %v2517, 0
      %v2536 = vsel %vm2522, %v2518, 0
      %v2539 = vsel %vm2522, %v2519, 0
      %v2542 = vsel %vm2522, %v2520, 0
      %v2545 = vsel %vm2522, %v2521, 0
      %2547 = vmatprep.subr.bf16.mxu0 %v2379
      %2548 = vmatpush1.bf16.msra.mxu0 %v2378
      %2549 = vmatprep.subr.bf16.mxu0 %v2381
      %2550 = vmatpush1.bf16.msra.mxu0 %v2380
      %2551 = vmatprep.subr.bf16.mxu0 %v2383
      %2552 = vmatpush1.bf16.msra.mxu0 %v2382
      %2553 = vmatprep.subr.bf16.mxu0 %v2385
      %2554 = vmatpush1.bf16.msra.mxu0 %v2384
      %2555 = vmatprep.subr.bf16.mxu0 0
      %2556 = vmatpush1.bf16.msra.mxu0 0
      %2557 = vmatprep.subr.bf16.mxu0 0
      %2558 = vmatpush1.bf16.msra.mxu0 0
      %2559 = vmatprep.subr.bf16.mxu0 0
      %2560 = vmatpush1.bf16.msra.mxu0 0
      %2561 = vmatprep.subr.bf16.mxu0 0
      %2562 = vmatpush1.bf16.msra.mxu0 0
      %2563 = vmatprep.subr.bf16.mxu0 0
      %2564 = vmatpush1.bf16.msra.mxu0 0
      %2565 = vmatprep.subr.bf16.mxu0 0
      %2566 = vmatpush1.bf16.msra.mxu0 0
      %2567 = vmatprep.subr.bf16.mxu0 0
      %2568 = vmatpush1.bf16.msra.mxu0 0
      %2569 = vmatprep.subr.bf16.mxu0 0
      %2570 = vmatpush1.bf16.msra.mxu0 0
      %2571 = vmatprep.subr.bf16.mxu0 0
      %2572 = vmatpush1.bf16.msra.mxu0 0
      %2573 = vmatprep.subr.bf16.mxu0 0
      %2574 = vmatpush1.bf16.msra.mxu0 0
      %2575 = vmatprep.subr.bf16.mxu0 0
      %2576 = vmatpush1.bf16.msra.mxu0 0
      %2577 = vmatprep.subr.bf16.mxu0 0
      %2578 = vmatpush1.bf16.msra.mxu0 0
      %2579 = vmatprep.mubr.bf16.mxu0 0
      %2580 = vmatmul.mubr.bf16.gmra.mrb[0].mxu0 %v2524
      %v2581 = vpop.f32.mrb[0].mxu0
      %v2582 = vadd.f32 %v2405, %v2581
      %v2583 = vpop.f32.mrb[0].mxu0
      %v2584 = vadd.f32 %v2405, %v2583
      %v2585 = vpop.f32.mrb[0].mxu0
      %v2586 = vadd.f32 %v2410, %v2585
      %v2587 = vpop.f32.mrb[0].mxu0
      %v2588 = vadd.f32 %v2410, %v2587
      %2589 = vmatprep.mubr.bf16.mxu0 0
      %2590 = vmatmul.mubr.bf16.gmra.mrb[0].mxu0 %v2527
      %v2591 = vpop.f32.mrb[0].mxu0
      %v2592 = vadd.f32 %v2415, %v2591
      %v2593 = vpop.f32.mrb[0].mxu0
      %v2594 = vadd.f32 %v2415, %v2593
      %v2595 = vpop.f32.mrb[0].mxu0
      %v2596 = vadd.f32 %v2420, %v2595
      %v2597 = vpop.f32.mrb[0].mxu0
      %v2598 = vadd.f32 %v2420, %v2597
      %2599 = vmatprep.mubr.bf16.mxu0 0
      %2600 = vmatmul.mubr.bf16.gmra.mrb[0].mxu0 %v2530
      %v2601 = vpop.f32.mrb[0].mxu0
      %v2602 = vadd.f32 %v2425, %v2601
      %v2603 = vpop.f32.mrb[0].mxu0
      %v2604 = vadd.f32 %v2425, %v2603
      %v2605 = vpop.f32.mrb[0].mxu0
      %v2606 = vadd.f32 %v2430, %v2605
      %v2607 = vpop.f32.mrb[0].mxu0
      %v2608 = vadd.f32 %v2430, %v2607
      %2609 = vmatprep.mubr.bf16.mxu0 0
      %2610 = vmatmul.mubr.bf16.gmra.mrb[0].mxu0 %v2533
      %v2611 = vpop.f32.mrb[0].mxu0
      %v2612 = vadd.f32 %v2435, %v2611
      %v2613 = vpop.f32.mrb[0].mxu0
      %v2614 = vadd.f32 %v2435, %v2613
      %v2615 = vpop.f32.mrb[0].mxu0
      %v2616 = vadd.f32 %v2440, %v2615
      %v2617 = vpop.f32.mrb[0].mxu0
      %v2618 = vadd.f32 %v2440, %v2617
      %2619 = vmatprep.mubr.bf16.mxu0 0
      %2620 = vmatmul.mubr.bf16.gmra.mrb[0].mxu0 %v2536
      %v2621 = vpop.f32.mrb[0].mxu0
      %v2622 = vadd.f32 %v2445, %v2621
      %v2623 = vpop.f32.mrb[0].mxu0
      %v2624 = vadd.f32 %v2445, %v2623
      %v2625 = vpop.f32.mrb[0].mxu0
      %v2626 = vadd.f32 %v2450, %v2625
      %v2627 = vpop.f32.mrb[0].mxu0
      %v2628 = vadd.f32 %v2450, %v2627
      %2629 = vmatprep.mubr.bf16.mxu0 0
      %2630 = vmatmul.mubr.bf16.gmra.mrb[0].mxu0 %v2539
      %v2631 = vpop.f32.mrb[0].mxu0
      %v2632 = vadd.f32 %v2455, %v2631
      %v2633 = vpop.f32.mrb[0].mxu0
      %v2634 = vadd.f32 %v2455, %v2633
      %v2635 = vpop.f32.mrb[0].mxu0
      %v2636 = vadd.f32 %v2460, %v2635
      %v2637 = vpop.f32.mrb[0].mxu0
      %v2638 = vadd.f32 %v2460, %v2637
      %2639 = vmatprep.mubr.bf16.mxu0 0
      %2640 = vmatmul.mubr.bf16.gmra.mrb[0].mxu0 %v2542
      %v2641 = vpop.f32.mrb[0].mxu0
      %v2642 = vadd.f32 %v2465, %v2641
      %v2643 = vpop.f32.mrb[0].mxu0
      %v2644 = vadd.f32 %v2465, %v2643
      %v2645 = vpop.f32.mrb[0].mxu0
      %v2646 = vadd.f32 %v2470, %v2645
      %v2647 = vpop.f32.mrb[0].mxu0
      %v2648 = vadd.f32 %v2470, %v2647
      %2649 = vmatprep.mubr.bf16.mxu0 0
      %2650 = vmatmul.mubr.bf16.gmra.mrb[0].mxu0 %v2545
      %v2651 = vpop.f32.mrb[0].mxu0
      %v2652 = vadd.f32 %v2475, %v2651
      %v2653 = vpop.f32.mrb[0].mxu0
      %v2654 = vadd.f32 %v2475, %v2653
      %v2655 = vpop.f32.mrb[0].mxu0
      %v2656 = vadd.f32 %v2480, %v2655
      %v2657 = vpop.f32.mrb[0].mxu0
      %v2658 = vadd.f32 %v2480, %v2657
      %2659 = vdwg.mxu0
      %v2660 = vmax.f32 %v2582, 0.0
      %v2661 = vmax.f32 %v2584, 0.0
      %v2662 = vmax.f32 %v2586, 0.0
      %v2663 = vmax.f32 %v2588, 0.0
      %v2664 = vmax.f32 %v2592, 0.0
      %v2665 = vmax.f32 %v2594, 0.0
      %v2666 = vmax.f32 %v2596, 0.0
      %v2667 = vmax.f32 %v2598, 0.0
      %v2668 = vmax.f32 %v2602, 0.0
      %v2669 = vmax.f32 %v2604, 0.0
      %v2670 = vmax.f32 %v2606, 0.0
      %v2671 = vmax.f32 %v2608, 0.0
      %v2672 = vmax.f32 %v2612, 0.0
      %v2673 = vmax.f32 %v2614, 0.0
      %v2674 = vmax.f32 %v2616, 0.0
      %v2675 = vmax.f32 %v2618, 0.0
      %v2676 = vmax.f32 %v2622, 0.0
      %v2677 = vmax.f32 %v2624, 0.0
      %v2678 = vmax.f32 %v2626, 0.0
      %v2679 = vmax.f32 %v2628, 0.0
      %v2680 = vmax.f32 %v2632, 0.0
      %v2681 = vmax.f32 %v2634, 0.0
      %v2682 = vmax.f32 %v2636, 0.0
      %v2683 = vmax.f32 %v2638, 0.0
      %v2684 = vmax.f32 %v2642, 0.0
      %v2685 = vmax.f32 %v2644, 0.0
      %v2686 = vmax.f32 %v2646, 0.0
      %v2687 = vmax.f32 %v2648, 0.0
      %v2688 = vmax.f32 %v2652, 0.0
      %v2689 = vmax.f32 %v2654, 0.0
      %v2690 = vmax.f32 %v2656, 0.0
      %v2691 = vmax.f32 %v2658, 0.0
      %v2692 = vld [vmem:[%s5] sm:$0xf]
      %v2693 = vld [vmem:[%s5 + $0x4] sm:$0xf]
      %v2694 = vld [vmem:[%s5 + $0x8] sm:$0xf]
      %v2695 = vld [vmem:[%s5 + $0xc] sm:$0xf]
      %v2696 = vld [vmem:[%s5 + $0x10] sm:$0xf]
      %v2697 = vld [vmem:[%s5 + $0x14] sm:$0xf]
      %v2698 = vld [vmem:[%s5 + $0x18] sm:$0xf]
      %v2699 = vld [vmem:[%s5 + $0x1c] sm:$0xf]
      %v2700 = vld [vmem:[%s5 + $0x20] sm:$0xf]
      %v2701 = vld [vmem:[%s5 + $0x24] sm:$0xf]
      %v2702 = vld [vmem:[%s5 + $0x28] sm:$0xf]
      %v2703 = vld [vmem:[%s5 + $0x2c] sm:$0xf]
      %v2704 = vld [vmem:[%s5 + $0x30] sm:$0xf]
      %v2705 = vld [vmem:[%s5 + $0x34] sm:$0xf]
      %v2706 = vld [vmem:[%s5 + $0x38] sm:$0xf]
      %v2707 = vld [vmem:[%s5 + $0x3c] sm:$0xf]
      %v2708 = vpack.c.bf16 %v2662, %v2660
      %v2709 = vpack.c.bf16 %v2663, %v2661
      %v2710 = vpack.c.bf16 %v2666, %v2664
      %v2711 = vpack.c.bf16 %v2667, %v2665
      %v2712 = vpack.c.bf16 %v2670, %v2668
      %v2713 = vpack.c.bf16 %v2671, %v2669
      %v2714 = vpack.c.bf16 %v2674, %v2672
      %v2715 = vpack.c.bf16 %v2675, %v2673
      %v2716 = vpack.c.bf16 %v2678, %v2676
      %v2717 = vpack.c.bf16 %v2679, %v2677
      %v2718 = vpack.c.bf16 %v2682, %v2680
      %v2719 = vpack.c.bf16 %v2683, %v2681
      %v2720 = vpack.c.bf16 %v2686, %v2684
      %v2721 = vpack.c.bf16 %v2687, %v2685
      %v2722 = vpack.c.bf16 %v2690, %v2688
      %v2723 = vpack.c.bf16 %v2691, %v2689
      %v2724 = vld [vmem:[%s6] sm:$0xff]
      %v2725 = vld [vmem:[%s6 + $0x8] sm:$0xff]
      %v2726 = vld [vmem:[%s6 + $0x10] sm:$0xff]
      %v2727 = vld [vmem:[%s6 + $0x18] sm:$0xff]
      %v2728 = vld [vmem:[%s6 + $0x20] sm:$0xff]
      %v2729 = vld [vmem:[%s6 + $0x28] sm:$0xff]
      %v2730 = vld [vmem:[%s6 + $0x30] sm:$0xff]
      %v2731 = vld [vmem:[%s6 + $0x38] sm:$0xff]
      %v2732 = vld [vmem:[%s6 + $0x40] sm:$0xff]
      %v2733 = vld [vmem:[%s6 + $0x48] sm:$0xff]
      %v2734 = vld [vmem:[%s6 + $0x50] sm:$0xff]
      %v2735 = vld [vmem:[%s6 + $0x58] sm:$0xff]
      %v2736 = vld [vmem:[%s6 + $0x60] sm:$0xff]
      %v2737 = vld [vmem:[%s6 + $0x68] sm:$0xff]
      %v2738 = vld [vmem:[%s6 + $0x70] sm:$0xff]
      %v2739 = vld [vmem:[%s6 + $0x78] sm:$0xff]
      %2741 = vset.pattern.permute.xlu0 0
      %2742 = vperm.xlu0 %2741, %v2724
      %v2743 = vpop.permute.xlu0 %2742
      %2746 = vset.pattern.permute.xlu0 0
      %2747 = vperm.xlu0 %2746, %v2725
      %v2748 = vpop.permute.xlu0 %2747
      %2751 = vset.pattern.permute.xlu0 0
      %2752 = vperm.xlu0 %2751, %v2726
      %v2753 = vpop.permute.xlu0 %2752
      %2756 = vset.pattern.permute.xlu0 0
      %2757 = vperm.xlu0 %2756, %v2727
      %v2758 = vpop.permute.xlu0 %2757
      %2761 = vset.pattern.permute.xlu0 0
      %2762 = vperm.xlu0 %2761, %v2728
      %v2763 = vpop.permute.xlu0 %2762
      %2766 = vset.pattern.permute.xlu0 0
      %2767 = vperm.xlu0 %2766, %v2729
      %v2768 = vpop.permute.xlu0 %2767
      %2771 = vset.pattern.permute.xlu0 0
      %2772 = vperm.xlu0 %2771, %v2730
      %v2773 = vpop.permute.xlu0 %2772
      %2776 = vset.pattern.permute.xlu0 0
      %2777 = vperm.xlu0 %2776, %v2731
      %v2778 = vpop.permute.xlu0 %2777
      %2781 = vset.pattern.permute.xlu0 0
      %2782 = vperm.xlu0 %2781, %v2732
      %v2783 = vpop.permute.xlu0 %2782
      %2786 = vset.pattern.permute.xlu0 0
      %2787 = vperm.xlu0 %2786, %v2733
      %v2788 = vpop.permute.xlu0 %2787
      %2791 = vset.pattern.permute.xlu0 0
      %2792 = vperm.xlu0 %2791, %v2734
      %v2793 = vpop.permute.xlu0 %2792
      %2796 = vset.pattern.permute.xlu0 0
      %2797 = vperm.xlu0 %2796, %v2735
      %v2798 = vpop.permute.xlu0 %2797
      %2801 = vset.pattern.permute.xlu0 0
      %2802 = vperm.xlu0 %2801, %v2736
      %v2803 = vpop.permute.xlu0 %2802
      %2806 = vset.pattern.permute.xlu0 0
      %2807 = vperm.xlu0 %2806, %v2737
      %v2808 = vpop.permute.xlu0 %2807
      %2811 = vset.pattern.permute.xlu0 0
      %2812 = vperm.xlu0 %2811, %v2738
      %v2813 = vpop.permute.xlu0 %2812
      %2816 = vset.pattern.permute.xlu0 0
      %2817 = vperm.xlu0 %2816, %v2739
      %v2818 = vpop.permute.xlu0 %2817
      %v2836 = vunpack.c.l.b16 %v2692
      %v2837 = vunpack.c.l.b16 %v2693
      %v2838 = vunpack.c.l.b16 %v2694
      %v2839 = vunpack.c.l.b16 %v2695
      %v2840 = vunpack.c.l.b16 %v2696
      %v2841 = vunpack.c.l.b16 %v2697
      %v2842 = vunpack.c.l.b16 %v2698
      %v2843 = vunpack.c.l.b16 %v2699
      %v2844 = vunpack.c.l.b16 %v2700
      %v2845 = vunpack.c.l.b16 %v2701
      %v2846 = vunpack.c.l.b16 %v2702
      %v2847 = vunpack.c.l.b16 %v2703
      %v2848 = vunpack.c.l.b16 %v2704
      %v2849 = vunpack.c.l.b16 %v2705
      %v2850 = vunpack.c.l.b16 %v2706
      %v2851 = vunpack.c.l.b16 %v2707
      %v2852 = vpack.c.b16 %v2837, %v2836
      %v2853 = vpack.c.b16 %v2839, %v2838
      %v2854 = vpack.c.b16 %v2841, %v2840
      %v2855 = vpack.c.b16 %v2843, %v2842
      %v2856 = vpack.c.b16 %v2845, %v2844
      %v2857 = vpack.c.b16 %v2847, %v2846
      %v2858 = vpack.c.b16 %v2849, %v2848
      %v2859 = vpack.c.b16 %v2851, %v2850
      %2868 = vmatprep.subr.bf16.mxu0 %v2709
      %2869 = vmatpush1.bf16.msra.mxu0 %v2708
      %2870 = vmatprep.subr.bf16.mxu0 %v2711
      %2871 = vmatpush1.bf16.msra.mxu0 %v2710
      %2872 = vmatprep.subr.bf16.mxu0 %v2713
      %2873 = vmatpush1.bf16.msra.mxu0 %v2712
      %2874 = vmatprep.subr.bf16.mxu0 %v2715
      %2875 = vmatpush1.bf16.msra.mxu0 %v2714
      %2876 = vmatprep.subr.bf16.mxu0 %v2717
      %2877 = vmatpush1.bf16.msra.mxu0 %v2716
      %2878 = vmatprep.subr.bf16.mxu0 %v2719
      %2879 = vmatpush1.bf16.msra.mxu0 %v2718
      %2880 = vmatprep.subr.bf16.mxu0 %v2721
      %2881 = vmatpush1.bf16.msra.mxu0 %v2720
      %2882 = vmatprep.subr.bf16.mxu0 %v2723
      %2883 = vmatpush1.bf16.msra.mxu0 %v2722
      %2884 = vmatprep.subr.bf16.mxu0 0
      %2885 = vmatpush1.bf16.msra.mxu0 0
      %2886 = vmatprep.subr.bf16.mxu0 0
      %2887 = vmatpush1.bf16.msra.mxu0 0
      %2888 = vmatprep.subr.bf16.mxu0 0
      %2889 = vmatpush1.bf16.msra.mxu0 0
      %2890 = vmatprep.subr.bf16.mxu0 0
      %2891 = vmatpush1.bf16.msra.mxu0 0
      %2892 = vmatprep.subr.bf16.mxu0 0
      %2893 = vmatpush1.bf16.msra.mxu0 0
      %2894 = vmatprep.subr.bf16.mxu0 0
      %2895 = vmatpush1.bf16.msra.mxu0 0
      %2896 = vmatprep.subr.bf16.mxu0 0
      %2897 = vmatpush1.bf16.msra.mxu0 0
      %2898 = vmatprep.subr.bf16.mxu0 0
      %2899 = vmatpush1.bf16.msra.mxu0 0
      %2900 = vmatprep.mubr.bf16.mxu0 0
      %2901 = vmatmul.mubr.bf16.gmra.mrb[0].mxu0 %v2852
      %v2902 = vpop.f32.mrb[0].mxu0
      %v2903 = vadd.f32 %v2743, %v2902
      %v2904 = vpop.f32.mrb[0].mxu0
      %v2905 = vadd.f32 %v2743, %v2904
      %v2906 = vpop.f32.mrb[0].mxu0
      %v2907 = vadd.f32 %v2748, %v2906
      %v2908 = vpop.f32.mrb[0].mxu0
      %v2909 = vadd.f32 %v2748, %v2908
      %2910 = vmatprep.mubr.bf16.mxu0 0
      %2911 = vmatmul.mubr.bf16.gmra.mrb[0].mxu0 %v2853
      %v2912 = vpop.f32.mrb[0].mxu0
      %v2913 = vadd.f32 %v2753, %v2912
      %v2914 = vpop.f32.mrb[0].mxu0
      %v2915 = vadd.f32 %v2753, %v2914
      %v2916 = vpop.f32.mrb[0].mxu0
      %v2917 = vadd.f32 %v2758, %v2916
      %v2918 = vpop.f32.mrb[0].mxu0
      %v2919 = vadd.f32 %v2758, %v2918
      %2920 = vmatprep.mubr.bf16.mxu0 0
      %2921 = vmatmul.mubr.bf16.gmra.mrb[0].mxu0 %v2854
      %v2922 = vpop.f32.mrb[0].mxu0
      %v2923 = vadd.f32 %v2763, %v2922
      %v2924 = vpop.f32.mrb[0].mxu0
      %v2925 = vadd.f32 %v2763, %v2924
      %v2926 = vpop.f32.mrb[0].mxu0
      %v2927 = vadd.f32 %v2768, %v2926
      %v2928 = vpop.f32.mrb[0].mxu0
      %v2929 = vadd.f32 %v2768, %v2928
      %2930 = vmatprep.mubr.bf16.mxu0 0
      %2931 = vmatmul.mubr.bf16.gmra.mrb[0].mxu0 %v2855
      %v2932 = vpop.f32.mrb[0].mxu0
      %v2933 = vadd.f32 %v2773, %v2932
      %v2934 = vpop.f32.mrb[0].mxu0
      %v2935 = vadd.f32 %v2773, %v2934
      %v2936 = vpop.f32.mrb[0].mxu0
      %v2937 = vadd.f32 %v2778, %v2936
      %v2938 = vpop.f32.mrb[0].mxu0
      %v2939 = vadd.f32 %v2778, %v2938
      %2940 = vmatprep.mubr.bf16.mxu0 0
      %2941 = vmatmul.mubr.bf16.gmra.mrb[0].mxu0 %v2856
      %v2942 = vpop.f32.mrb[0].mxu0
      %v2943 = vadd.f32 %v2783, %v2942
      %v2944 = vpop.f32.mrb[0].mxu0
      %v2945 = vadd.f32 %v2783, %v2944
      %v2946 = vpop.f32.mrb[0].mxu0
      %v2947 = vadd.f32 %v2788, %v2946
      %v2948 = vpop.f32.mrb[0].mxu0
      %v2949 = vadd.f32 %v2788, %v2948
      %2950 = vmatprep.mubr.bf16.mxu0 0
      %2951 = vmatmul.mubr.bf16.gmra.mrb[0].mxu0 %v2857
      %v2952 = vpop.f32.mrb[0].mxu0
      %v2953 = vadd.f32 %v2793, %v2952
      %v2954 = vpop.f32.mrb[0].mxu0
      %v2955 = vadd.f32 %v2793, %v2954
      %v2956 = vpop.f32.mrb[0].mxu0
      %v2957 = vadd.f32 %v2798, %v2956
      %v2958 = vpop.f32.mrb[0].mxu0
      %v2959 = vadd.f32 %v2798, %v2958
      %2960 = vmatprep.mubr.bf16.mxu0 0
      %2961 = vmatmul.mubr.bf16.gmra.mrb[0].mxu0 %v2858
      %v2962 = vpop.f32.mrb[0].mxu0
      %v2963 = vadd.f32 %v2803, %v2962
      %v2964 = vpop.f32.mrb[0].mxu0
      %v2965 = vadd.f32 %v2803, %v2964
      %v2966 = vpop.f32.mrb[0].mxu0
      %v2967 = vadd.f32 %v2808, %v2966
      %v2968 = vpop.f32.mrb[0].mxu0
      %v2969 = vadd.f32 %v2808, %v2968
      %2970 = vmatprep.mubr.bf16.mxu0 0
      %2971 = vmatmul.mubr.bf16.gmra.mrb[0].mxu0 %v2859
      %v2972 = vpop.f32.mrb[0].mxu0
      %v2973 = vadd.f32 %v2813, %v2972
      %v2974 = vpop.f32.mrb[0].mxu0
      %v2975 = vadd.f32 %v2813, %v2974
      %v2976 = vpop.f32.mrb[0].mxu0
      %v2977 = vadd.f32 %v2818, %v2976
      %v2978 = vpop.f32.mrb[0].mxu0
      %v2979 = vadd.f32 %v2818, %v2978
      %2980 = vdwg.mxu0
      %v2981 = vmax.f32 %v2903, 0.0
      %v2982 = vmax.f32 %v2905, 0.0
      %v2983 = vmax.f32 %v2907, 0.0
      %v2984 = vmax.f32 %v2909, 0.0
      %v2985 = vmax.f32 %v2913, 0.0
      %v2986 = vmax.f32 %v2915, 0.0
      %v2987 = vmax.f32 %v2917, 0.0
      %v2988 = vmax.f32 %v2919, 0.0
      %v2989 = vmax.f32 %v2923, 0.0
      %v2990 = vmax.f32 %v2925, 0.0
      %v2991 = vmax.f32 %v2927, 0.0
      %v2992 = vmax.f32 %v2929, 0.0
      %v2993 = vmax.f32 %v2933, 0.0
      %v2994 = vmax.f32 %v2935, 0.0
      %v2995 = vmax.f32 %v2937, 0.0
      %v2996 = vmax.f32 %v2939, 0.0
      %v2997 = vmax.f32 %v2943, 0.0
      %v2998 = vmax.f32 %v2945, 0.0
      %v2999 = vmax.f32 %v2947, 0.0
      %v3000 = vmax.f32 %v2949, 0.0
      %v3001 = vmax.f32 %v2953, 0.0
      %v3002 = vmax.f32 %v2955, 0.0
      %v3003 = vmax.f32 %v2957, 0.0
      %v3004 = vmax.f32 %v2959, 0.0
      %v3005 = vmax.f32 %v2963, 0.0
      %v3006 = vmax.f32 %v2965, 0.0
      %v3007 = vmax.f32 %v2967, 0.0
      %v3008 = vmax.f32 %v2969, 0.0
      %v3009 = vmax.f32 %v2973, 0.0
      %v3010 = vmax.f32 %v2975, 0.0
      %v3011 = vmax.f32 %v2977, 0.0
      %v3012 = vmax.f32 %v2979, 0.0
      %v3013 = vld [vmem:[%s7] sm:$0x3]
      %v3014 = vpack.c.bf16 %v2983, %v2981
      %v3015 = vpack.c.bf16 %v2984, %v2982
      %v3016 = vpack.c.bf16 %v2987, %v2985
      %v3017 = vpack.c.bf16 %v2988, %v2986
      %v3018 = vpack.c.bf16 %v2991, %v2989
      %v3019 = vpack.c.bf16 %v2992, %v2990
      %v3020 = vpack.c.bf16 %v2995, %v2993
      %v3021 = vpack.c.bf16 %v2996, %v2994
      %v3022 = vpack.c.bf16 %v2999, %v2997
      %v3023 = vpack.c.bf16 %v3000, %v2998
      %v3024 = vpack.c.bf16 %v3003, %v3001
      %v3025 = vpack.c.bf16 %v3004, %v3002
      %v3026 = vpack.c.bf16 %v3007, %v3005
      %v3027 = vpack.c.bf16 %v3008, %v3006
      %v3028 = vpack.c.bf16 %v3011, %v3009
      %v3029 = vpack.c.bf16 %v3012, %v3010
      %v3030 = vld [vmem:[%s8] sm:$0xf]
      %3032 = vset.pattern.permute.xlu0 0
      %3033 = vperm.xlu0 %3032, %v3030
      %v3034 = vpop.permute.xlu0 %3033
      %3036 = vmatprep.subr.bf16.mxu0 %v3015
      %3037 = vmatpush1.bf16.msra.mxu0 %v3014
      %3038 = vmatprep.subr.bf16.mxu0 %v3017
      %3039 = vmatpush1.bf16.msra.mxu0 %v3016
      %3040 = vmatprep.subr.bf16.mxu0 %v3019
      %3041 = vmatpush1.bf16.msra.mxu0 %v3018
      %3042 = vmatprep.subr.bf16.mxu0 %v3021
      %3043 = vmatpush1.bf16.msra.mxu0 %v3020
      %3044 = vmatprep.subr.bf16.mxu0 %v3023
      %3045 = vmatpush1.bf16.msra.mxu0 %v3022
      %3046 = vmatprep.subr.bf16.mxu0 %v3025
      %3047 = vmatpush1.bf16.msra.mxu0 %v3024
      %3048 = vmatprep.subr.bf16.mxu0 %v3027
      %3049 = vmatpush1.bf16.msra.mxu0 %v3026
      %3050 = vmatprep.subr.bf16.mxu0 %v3029
      %3051 = vmatpush1.bf16.msra.mxu0 %v3028
      %3052 = vmatprep.subr.bf16.mxu0 0
      %3053 = vmatpush1.bf16.msra.mxu0 0
      %3054 = vmatprep.subr.bf16.mxu0 0
      %3055 = vmatpush1.bf16.msra.mxu0 0
      %3056 = vmatprep.subr.bf16.mxu0 0
      %3057 = vmatpush1.bf16.msra.mxu0 0
      %3058 = vmatprep.subr.bf16.mxu0 0
      %3059 = vmatpush1.bf16.msra.mxu0 0
      %3060 = vmatprep.subr.bf16.mxu0 0
      %3061 = vmatpush1.bf16.msra.mxu0 0
      %3062 = vmatprep.subr.bf16.mxu0 0
      %3063 = vmatpush1.bf16.msra.mxu0 0
      %3064 = vmatprep.subr.bf16.mxu0 0
      %3065 = vmatpush1.bf16.msra.mxu0 0
      %3066 = vmatprep.subr.bf16.mxu0 0
      %3067 = vmatpush1.bf16.msra.mxu0 0
      %3068 = vmatprep.mubr.bf16.mxu0 0
      %3069 = vmatmul.mubr.bf16.gmra.mrb[0].mxu0 %v3013
      %v3070 = vpop.f32.mrb[0].mxu0
      %v3071 = vadd.f32 %v3034, %v3070
      %v3072 = vpop.f32.mrb[0].mxu0
      %v3073 = vadd.f32 %v3034, %v3072
      %v3074 = vpop.f32.mrb[0].mxu0
      %v3075 = vpop.f32.mrb[0].mxu0
      %3076 = vdwg.mxu0
      %v3079 = vcombine.low %v3071, %v3073
      %3081 = vst [vmem:[%s334] sm:$0xff] %v3079
      %s3082 = smul.u32 2, %s20
      %p3083 = scmp.lt.s32.totalorder %s3082, 7
      %s3084 = scalar_select %p3083, %s3082, 7
      %s3085 = smul.addr %s3084, 4
      %s3086 = scalar_lea.vmem %s9, %s3085
      // Predicated region
      $region57: #{tiny_nerf.1} parent=55 // pred_check
        %p3087 = pneg %p232
      $region58: #{tiny_nerf.1} parent=55 // pred_check_branch
        %3089 = sbr.rel (%p3087) target = $region60
      $region59: #{tiny_nerf.1} parent=55 // pred_region
        %s3090 = smul.u32 2, %s20
      $region60: #{tiny_nerf.1} parent=55 // pred_fallthru
        _
    $region56: #{tiny_nerf.1} parent=5 // pred_fallthru
      _
    %p3091 = scmp.le.s32.totalorder 2, %s15
    // Predicated region
    $region61: #{tiny_nerf.1} parent=5 // pred_check
      %p3092 = pneg %p3091
    $region62: #{tiny_nerf.1} parent=5 // pred_check_branch
      %3094 = sbr.rel (%p3092) target = $region64
    $region63: #{tiny_nerf.1} parent=5 // pred_region
      %s3095 = ssub.s32 %s15, 2
      // Predicated region
      $region65: #{tiny_nerf.1} parent=63 // pred_check
        %p3096 = pneg %p238
      $region66: #{tiny_nerf.1} parent=63 // pred_check_branch
        %3098 = sbr.rel (%p3096) target = $region68
      $region67: #{tiny_nerf.1} parent=63 // pred_region
        %s3099 = smul.u32 2, %s21
        %p3100 = scmp.lt.s32.totalorder %s3099, 7
        %s3101 = scalar_select %p3100, %s3099, 7
        %s3102 = smul.addr %s3101, 4
        %s3103 = scalar_lea.vmem %s9, %s3102
      $region68: #{tiny_nerf.1} parent=63 // pred_fallthru
        _
    $region64: #{tiny_nerf.1} parent=5 // pred_fallthru
      _
  $region6: #{tiny_nerf.1} parent=0 // loop_footer
    %s19 = sadd.s32 1, %s15
  $region7: #{tiny_nerf.1} parent=0 // loop_footer_branch
    %14 = sbr.rel target = $region3
  $region8: #{tiny_nerf.1} parent=0 // loop_exit
    _

</llo_original>
